<compile_context>
chip_gen: v5e
topology: v5e:2x2
jax: 0.10.0
libtpu: 0.0.40
codegen_flags: <defaults>
</compile_context>

<pallas_src>
import math

import jax
import jax.numpy as jnp
from jax import lax
from jax.experimental import pallas as pl
from jax.experimental.pallas import tpu as pltpu

LEAKY_SLOPE = 0.01    # torch.nn.LeakyReLU default negative_slope
OUT_PAD = 128         # lane-dense width for the final action slab


def _leaky(x):
    return jnp.where(x > 0, x, LEAKY_SLOPE * x)


# ----------------------------------------------------------------------------
# Fused GRU + MLP kernel (single invocation, everything VMEM-resident)
# ----------------------------------------------------------------------------
def make_actor_kernel(T, B, M, H, num_mlp_layers):
    assert num_mlp_layers >= 2

    def kernel(*refs):
        (x_ref, h0_ref,
         w_i_ref, w_h_ref, b_i_ref, b_h_ref,
         w1a_ref, w1b_ref, b1_ref) = refs[:9]
        n_tail = 2 * (num_mlp_layers - 1)
        tail_refs = refs[9:9 + n_tail]
        act_ref, h_out_ref, lat_scratch = refs[9 + n_tail:]

        x_flat = x_ref[...]                       # (T*B, M+3)
        x_meas = x_flat[:, :M]                    # (T*B, M) static lane slice

        # ---- GRU ----
        # Input projection + input bias for every timestep in one MXU call
        # (completely off the serial recurrence chain).
        gates_i = (jnp.dot(x_meas, w_i_ref[...], preferred_element_type=jnp.float32)
                   + b_i_ref[...])                # (T*B, 3H), columns = [r | z | n]

        w_h = w_h_ref[...]                        # (H, 3H), loaded once (3 vregs)
        b_h = b_h_ref[...]                        # (1, 3H)

        h = h0_ref[...]                           # (B, H)
        for t in range(T):                        # static trip count -> fully unrolled
            gi = gates_i[t * B:(t + 1) * B, :]    # (B, 3H) static slice
            gh = jnp.dot(h, w_h, preferred_element_type=jnp.float32) + b_h
            # One EUP sigmoid over the combined [r | z] lanes (PyTorch order keeps
            # them contiguous), then cheap lane slices for the two gates.
            rz = jax.nn.sigmoid(gi[:, :2 * H] + gh[:, :2 * H])
            r = rz[:, :H]
            z = rz[:, H:]
            n = jnp.tanh(gi[:, 2 * H:] + r * gh[:, 2 * H:])
            # h' = (1 - z) * n + z * h  ==  n + z * (h - n)   (one fewer op on the chain)
            h = n + z * (h - n)
            lat_scratch[t * B:(t + 1) * B, :] = h  # per-step latent stays in VMEM

        h_out_ref[...] = h                        # final hidden state

        # ---- MLP (feat = [latent | x]); first layer split -> no lane concat ----
        lat = lat_scratch[...]                    # (T*B, H)
        cur = _leaky(jnp.dot(lat, w1a_ref[...], preferred_element_type=jnp.float32)
                     + jnp.dot(x_flat, w1b_ref[...], preferred_element_type=jnp.float32)
                     + b1_ref[...])
        for li in range(num_mlp_layers - 1):
            w = tail_refs[2 * li][...]
            b = tail_refs[2 * li + 1][...]
            cur = jnp.dot(cur, w, preferred_element_type=jnp.float32) + b
            if li < num_mlp_layers - 2:           # no activation after the last Linear
                cur = _leaky(cur)
        act_ref[...] = cur                        # (T*B, OUT_PAD) lane-dense store

    return kernel


# ----------------------------------------------------------------------------
# Wrapper: reshape glue + pallas_call
# ----------------------------------------------------------------------------
def gru_mlp_actor_forward(x, h0, params, measurement_dim, output_size):
    T, B, F = x.shape
    M = measurement_dim
    H = h0.shape[-1]
    num_mlp_layers = (len(params) - 5) // 2
    out_pad = params[-2].shape[-1]

    x_flat = x.reshape(T * B, F)
    kernel = make_actor_kernel(T, B, M, H, num_mlp_layers)

    vmem = pl.BlockSpec(memory_space=pltpu.MemorySpace.VMEM)
    act_pad, h_final = pl.pallas_call(
        kernel,
        in_specs=[vmem] * (2 + len(params)),
        out_specs=(vmem, vmem),
        out_shape=(jax.ShapeDtypeStruct((T * B, out_pad), jnp.float32),
                   jax.ShapeDtypeStruct((B, H), jnp.float32)),
        scratch_shapes=[pltpu.VMEM((T * B, H), jnp.float32)],
    )(x_flat, h0, *params)

    action = act_pad[:, :output_size].reshape(T, B, output_size)
    return action, h_final


# ----------------------------------------------------------------------------
# Deterministic parameter construction (matching the PyTorch module's shapes/init)
# ----------------------------------------------------------------------------
def init_params(key, measurement_dim, hidden_dim, mlp_shape, output_size):
    M, H = measurement_dim, hidden_dim
    F = M + 3
    n_mlp = len(mlp_shape) + 1
    keys = jax.random.split(key, 4 + 2 * n_mlp)
    k = iter(keys)

    # GRU: kaiming_normal_ on W_ih (3H, M) and W_hh (3H, H); PyTorch default biases.
    w_ih = jax.random.normal(next(k), (3 * H, M), jnp.float32) * math.sqrt(2.0 / M)
    w_hh = jax.random.normal(next(k), (3 * H, H), jnp.float32) * math.sqrt(2.0 / H)
    bound = 1.0 / math.sqrt(H)
    b_ih = jax.random.uniform(next(k), (3 * H,), jnp.float32, -bound, bound)
    b_hh = jax.random.uniform(next(k), (3 * H,), jnp.float32, -bound, bound)

    # Fused, pre-transposed: columns ordered [r | z | n] (PyTorch gate order).
    w_i = jnp.transpose(w_ih)            # (M, 3H)
    w_h = jnp.transpose(w_hh)            # (H, 3H)
    b_i = b_ih.reshape(1, 3 * H)
    b_h = b_hh.reshape(1, 3 * H)

    # MLP: Linear(H+F -> mlp_shape[0]) LeakyReLU ... Linear(mlp_shape[-1] -> output_size)
    dims = [H + F] + list(mlp_shape) + [output_size]
    orth = jax.nn.initializers.orthogonal(scale=math.sqrt(2.0))
    ws, bs = [], []
    for li in range(n_mlp):
        fan_in, fan_out = dims[li], dims[li + 1]
        w = orth(next(k), (fan_out, fan_in), jnp.float32)     # PyTorch (out, in)
        b_bound = 1.0 / math.sqrt(fan_in)
        b = jax.random.uniform(next(k), (fan_out,), jnp.float32, -b_bound, b_bound)
        ws.append(jnp.transpose(w))                            # (in, out) for the kernel
        bs.append(b.reshape(1, fan_out))

    # Split layer 0 into latent / input halves (feat = [latent | x]).
    w1a, w1b = ws[0][:H, :], ws[0][H:, :]

    # Zero-pad the final layer to a 128-lane slab (sliced back in the wrapper).
    w_last = jnp.zeros((dims[-2], OUT_PAD), jnp.float32).at[:, :output_size].set(ws[-1])
    b_last = jnp.zeros((1, OUT_PAD), jnp.float32).at[:, :output_size].set(bs[-1])

    tail = []
    for li in range(1, n_mlp - 1):
        tail += [ws[li], bs[li]]
    tail += [w_last, b_last]

    return (w_i, w_h, b_i, b_h, w1a, w1b, bs[0], *tail)


# ----------------------------------------------------------------------------
# Pure-JAX reference (same math as torch.nn.GRU + MLP) for verification
# ----------------------------------------------------------------------------
def reference_forward(x, h0, params, measurement_dim, output_size):
    T, B, F = x.shape
    M = measurement_dim
    H = h0.shape[-1]
    num_mlp_layers = (len(params) - 5) // 2
    w_i, w_h, b_i, b_h, w1a, w1b, b1 = params[:7]
    tail = params[7:]

    def step(h, x_t):
        gi = x_t @ w_i + b_i
        gh = h @ w_h + b_h
        r = jax.nn.sigmoid(gi[:, :H] + gh[:, :H])
        z = jax.nn.sigmoid(gi[:, H:2 * H] + gh[:, H:2 * H])
        n = jnp.tanh(gi[:, 2 * H:] + r * gh[:, 2 * H:])
        h_new = (1.0 - z) * n + z * h
        return h_new, h_new

    h_final, lat = lax.scan(step, h0, x[:, :, :M])
    lat_flat = lat.reshape(T * B, H)
    x_flat = x.reshape(T * B, F)

    cur = jnp.where((t := lat_flat @ w1a + x_flat @ w1b + b1) > 0, t, LEAKY_SLOPE * t)
    for li in range(num_mlp_layers - 1):
        w, b = tail[2 * li], tail[2 * li + 1]
        cur = cur @ w + b
        if li < num_mlp_layers - 2:
            cur = jnp.where(cur > 0, cur, LEAKY_SLOPE * cur)
    action = cur[:, :output_size].reshape(T, B, output_size)
    return action, h_final


if __name__ == "__main__":
    measurement_dim = 16
    hidden_dim = 32
    mlp_shape = (64, 64)
    output_size = 8
    batch_size = 4
    seq_len = 8

    key = jax.random.PRNGKey(0)
    k_param, k_x = jax.random.split(key)
    params = init_params(k_param, measurement_dim, hidden_dim, mlp_shape, output_size)

    # input: (T, B, measurement_dim + 3); initial hidden state: zeros (module init_hidden)
    x = jax.random.normal(k_x, (seq_len, batch_size, measurement_dim + 3), jnp.float32)
    h0 = jnp.zeros((batch_size, hidden_dim), jnp.float32)

    action, h_new = gru_mlp_actor_forward(x, h0, params, measurement_dim, output_size)
    action = jax.block_until_ready(action)
    h_new = jax.block_until_ready(h_new)

    # verify against pure-JAX reference
    action_ref, h_ref = reference_forward(x, h0, params, measurement_dim, output_size)
    assert action.shape == (seq_len, batch_size, output_size)
    assert h_new.shape == (batch_size, hidden_dim)
    assert jnp.allclose(action, action_ref, rtol=1e-4, atol=1e-4), \
        float(jnp.max(jnp.abs(action - action_ref)))
    assert jnp.allclose(h_new, h_ref, rtol=1e-4, atol=1e-4)

    # TODO(synk): init_by_done / init_hidden are caller-side hidden-state resets (plain
    # array zeroing outside the forward pass), not part of the kernel.
    print("KERNEL_OK")
</pallas_src>

<mosaic_0001>
module attributes {stable_mosaic.version = 11 : i64} {
  func.func @kernel(%arg0: memref<32x19xf32, #tpu.memory_space<vmem>>, %arg1: memref<4x32xf32, #tpu.memory_space<vmem>>, %arg2: memref<16x96xf32, #tpu.memory_space<vmem>>, %arg3: memref<32x96xf32, #tpu.memory_space<vmem>>, %arg4: memref<1x96xf32, #tpu.memory_space<vmem>>, %arg5: memref<1x96xf32, #tpu.memory_space<vmem>>, %arg6: memref<32x64xf32, #tpu.memory_space<vmem>>, %arg7: memref<19x64xf32, #tpu.memory_space<vmem>>, %arg8: memref<1x64xf32, #tpu.memory_space<vmem>>, %arg9: memref<64x64xf32, #tpu.memory_space<vmem>>, %arg10: memref<1x64xf32, #tpu.memory_space<vmem>>, %arg11: memref<64x128xf32, #tpu.memory_space<vmem>>, %arg12: memref<1x128xf32, #tpu.memory_space<vmem>>, %arg13: memref<32x128xf32, #tpu.memory_space<vmem>>, %arg14: memref<4x32xf32, #tpu.memory_space<vmem>>, %arg15: memref<32x32xf32, #tpu.memory_space<vmem>>) attributes {dimension_semantics = [], scalar_prefetch = 0 : i64, scratch_operands = 1 : i64, tpu.core_type = #tpu.core_type<tc>} {
    %c0 = arith.constant 0 : index
    %c0_0 = arith.constant 0 : index
    %0 = vector.load %arg0[%c0, %c0_0] : memref<32x19xf32, #tpu.memory_space<vmem>>, vector<32x19xf32>
    %1 = vector.extract_strided_slice %0 {offsets = [0, 0], sizes = [32, 16], strides = [1, 1]} : vector<32x19xf32> to vector<32x16xf32>
    %c0_1 = arith.constant 0 : index
    %c0_2 = arith.constant 0 : index
    %2 = vector.load %arg2[%c0_1, %c0_2] : memref<16x96xf32, #tpu.memory_space<vmem>>, vector<16x96xf32>
    %cst = arith.constant dense<0.000000e+00> : vector<32x96xf32>
    %3 = tpu.matmul %1, %2, %cst {dimension_numbers = #tpu.dot_dimension_numbers<[1], [0], [0], [1], [0, 0, 1, 1], [], []>} : vector<32x16xf32>, vector<16x96xf32>, vector<32x96xf32> -> vector<32x96xf32>
    %c0_3 = arith.constant 0 : index
    %c0_4 = arith.constant 0 : index
    %4 = vector.load %arg4[%c0_3, %c0_4] : memref<1x96xf32, #tpu.memory_space<vmem>>, vector<1x96xf32>
    %5 = vector.broadcast %4 : vector<1x96xf32> to vector<32x96xf32>
    %6 = arith.addf %3, %5 : vector<32x96xf32>
    %c0_5 = arith.constant 0 : index
    %c0_6 = arith.constant 0 : index
    %7 = vector.load %arg3[%c0_5, %c0_6] : memref<32x96xf32, #tpu.memory_space<vmem>>, vector<32x96xf32>
    %c0_7 = arith.constant 0 : index
    %c0_8 = arith.constant 0 : index
    %8 = vector.load %arg5[%c0_7, %c0_8] : memref<1x96xf32, #tpu.memory_space<vmem>>, vector<1x96xf32>
    %c0_9 = arith.constant 0 : index
    %c0_10 = arith.constant 0 : index
    %9 = vector.load %arg1[%c0_9, %c0_10] : memref<4x32xf32, #tpu.memory_space<vmem>>, vector<4x32xf32>
    %10 = vector.extract_strided_slice %6 {offsets = [0, 0], sizes = [4, 96], strides = [1, 1]} : vector<32x96xf32> to vector<4x96xf32>
    %cst_11 = arith.constant dense<0.000000e+00> : vector<4x96xf32>
    %11 = tpu.matmul %9, %7, %cst_11 {dimension_numbers = #tpu.dot_dimension_numbers<[1], [0], [0], [1], [0, 0, 1, 1], [], []>} : vector<4x32xf32>, vector<32x96xf32>, vector<4x96xf32> -> vector<4x96xf32>
    %12 = vector.broadcast %8 : vector<1x96xf32> to vector<4x96xf32>
    %13 = arith.addf %11, %12 : vector<4x96xf32>
    %14 = vector.extract_strided_slice %10 {offsets = [0, 0], sizes = [4, 64], strides = [1, 1]} : vector<4x96xf32> to vector<4x64xf32>
    %15 = vector.extract_strided_slice %13 {offsets = [0, 0], sizes = [4, 64], strides = [1, 1]} : vector<4x96xf32> to vector<4x64xf32>
    %16 = arith.addf %14, %15 : vector<4x64xf32>
    %17 = arith.negf %16 : vector<4x64xf32>
    %18 = math.exp %17 : vector<4x64xf32>
    %cst_12 = arith.constant 1.000000e+00 : f32
    %19 = vector.broadcast %cst_12 : f32 to vector<4x64xf32>
    %20 = arith.addf %19, %18 : vector<4x64xf32>
    %21 = arith.divf %19, %20 : vector<4x64xf32>
    %22 = vector.extract_strided_slice %21 {offsets = [0, 0], sizes = [4, 32], strides = [1, 1]} : vector<4x64xf32> to vector<4x32xf32>
    %23 = vector.extract_strided_slice %21 {offsets = [0, 32], sizes = [4, 32], strides = [1, 1]} : vector<4x64xf32> to vector<4x32xf32>
    %24 = vector.extract_strided_slice %10 {offsets = [0, 64], sizes = [4, 32], strides = [1, 1]} : vector<4x96xf32> to vector<4x32xf32>
    %25 = vector.extract_strided_slice %13 {offsets = [0, 64], sizes = [4, 32], strides = [1, 1]} : vector<4x96xf32> to vector<4x32xf32>
    %26 = arith.mulf %22, %25 : vector<4x32xf32>
    %27 = arith.addf %24, %26 : vector<4x32xf32>
    %28 = math.tanh %27 : vector<4x32xf32>
    %29 = arith.subf %9, %28 : vector<4x32xf32>
    %30 = arith.mulf %23, %29 : vector<4x32xf32>
    %31 = arith.addf %28, %30 : vector<4x32xf32>
    %c0_13 = arith.constant 0 : index
    %c0_14 = arith.constant 0 : index
    %32 = vector.load %arg15[%c0_13, %c0_14] : memref<32x32xf32, #tpu.memory_space<vmem>>, vector<4x32xf32>
    tpu.vector_store %arg15[%c0_13, %c0_14], %31 {strides = array<i32>} : memref<32x32xf32, #tpu.memory_space<vmem>>, vector<4x32xf32>,
    %33 = vector.extract_strided_slice %6 {offsets = [4, 0], sizes = [4, 96], strides = [1, 1]} : vector<32x96xf32> to vector<4x96xf32>
    %cst_15 = arith.constant dense<0.000000e+00> : vector<4x96xf32>
    %34 = tpu.matmul %31, %7, %cst_15 {dimension_numbers = #tpu.dot_dimension_numbers<[1], [0], [0], [1], [0, 0, 1, 1], [], []>} : vector<4x32xf32>, vector<32x96xf32>, vector<4x96xf32> -> vector<4x96xf32>
    %35 = vector.broadcast %8 : vector<1x96xf32> to vector<4x96xf32>
    %36 = arith.addf %34, %35 : vector<4x96xf32>
    %37 = vector.extract_strided_slice %33 {offsets = [0, 0], sizes = [4, 64], strides = [1, 1]} : vector<4x96xf32> to vector<4x64xf32>
    %38 = vector.extract_strided_slice %36 {offsets = [0, 0], sizes = [4, 64], strides = [1, 1]} : vector<4x96xf32> to vector<4x64xf32>
    %39 = arith.addf %37, %38 : vector<4x64xf32>
    %40 = arith.negf %39 : vector<4x64xf32>
    %41 = math.exp %40 : vector<4x64xf32>
    %cst_16 = arith.constant 1.000000e+00 : f32
    %42 = vector.broadcast %cst_16 : f32 to vector<4x64xf32>
    %43 = arith.addf %42, %41 : vector<4x64xf32>
    %44 = arith.divf %42, %43 : vector<4x64xf32>
    %45 = vector.extract_strided_slice %44 {offsets = [0, 0], sizes = [4, 32], strides = [1, 1]} : vector<4x64xf32> to vector<4x32xf32>
    %46 = vector.extract_strided_slice %44 {offsets = [0, 32], sizes = [4, 32], strides = [1, 1]} : vector<4x64xf32> to vector<4x32xf32>
    %47 = vector.extract_strided_slice %33 {offsets = [0, 64], sizes = [4, 32], strides = [1, 1]} : vector<4x96xf32> to vector<4x32xf32>
    %48 = vector.extract_strided_slice %36 {offsets = [0, 64], sizes = [4, 32], strides = [1, 1]} : vector<4x96xf32> to vector<4x32xf32>
    %49 = arith.mulf %45, %48 : vector<4x32xf32>
    %50 = arith.addf %47, %49 : vector<4x32xf32>
    %51 = math.tanh %50 : vector<4x32xf32>
    %52 = arith.subf %31, %51 : vector<4x32xf32>
    %53 = arith.mulf %46, %52 : vector<4x32xf32>
    %54 = arith.addf %51, %53 : vector<4x32xf32>
    %c4 = arith.constant 4 : index
    %c0_17 = arith.constant 0 : index
    %55 = vector.load %arg15[%c4, %c0_17] : memref<32x32xf32, #tpu.memory_space<vmem>>, vector<4x32xf32>
    tpu.vector_store %arg15[%c4, %c0_17], %54 {strides = array<i32>} : memref<32x32xf32, #tpu.memory_space<vmem>>, vector<4x32xf32>,
    %56 = vector.extract_strided_slice %6 {offsets = [8, 0], sizes = [4, 96], strides = [1, 1]} : vector<32x96xf32> to vector<4x96xf32>
    %cst_18 = arith.constant dense<0.000000e+00> : vector<4x96xf32>
    %57 = tpu.matmul %54, %7, %cst_18 {dimension_numbers = #tpu.dot_dimension_numbers<[1], [0], [0], [1], [0, 0, 1, 1], [], []>} : vector<4x32xf32>, vector<32x96xf32>, vector<4x96xf32> -> vector<4x96xf32>
    %58 = vector.broadcast %8 : vector<1x96xf32> to vector<4x96xf32>
    %59 = arith.addf %57, %58 : vector<4x96xf32>
    %60 = vector.extract_strided_slice %56 {offsets = [0, 0], sizes = [4, 64], strides = [1, 1]} : vector<4x96xf32> to vector<4x64xf32>
    %61 = vector.extract_strided_slice %59 {offsets = [0, 0], sizes = [4, 64], strides = [1, 1]} : vector<4x96xf32> to vector<4x64xf32>
    %62 = arith.addf %60, %61 : vector<4x64xf32>
    %63 = arith.negf %62 : vector<4x64xf32>
    %64 = math.exp %63 : vector<4x64xf32>
    %cst_19 = arith.constant 1.000000e+00 : f32
    %65 = vector.broadcast %cst_19 : f32 to vector<4x64xf32>
    %66 = arith.addf %65, %64 : vector<4x64xf32>
    %67 = arith.divf %65, %66 : vector<4x64xf32>
    %68 = vector.extract_strided_slice %67 {offsets = [0, 0], sizes = [4, 32], strides = [1, 1]} : vector<4x64xf32> to vector<4x32xf32>
    %69 = vector.extract_strided_slice %67 {offsets = [0, 32], sizes = [4, 32], strides = [1, 1]} : vector<4x64xf32> to vector<4x32xf32>
    %70 = vector.extract_strided_slice %56 {offsets = [0, 64], sizes = [4, 32], strides = [1, 1]} : vector<4x96xf32> to vector<4x32xf32>
    %71 = vector.extract_strided_slice %59 {offsets = [0, 64], sizes = [4, 32], strides = [1, 1]} : vector<4x96xf32> to vector<4x32xf32>
    %72 = arith.mulf %68, %71 : vector<4x32xf32>
    %73 = arith.addf %70, %72 : vector<4x32xf32>
    %74 = math.tanh %73 : vector<4x32xf32>
    %75 = arith.subf %54, %74 : vector<4x32xf32>
    %76 = arith.mulf %69, %75 : vector<4x32xf32>
    %77 = arith.addf %74, %76 : vector<4x32xf32>
    %c8 = arith.constant 8 : index
    %c0_20 = arith.constant 0 : index
    %78 = vector.load %arg15[%c8, %c0_20] : memref<32x32xf32, #tpu.memory_space<vmem>>, vector<4x32xf32>
    tpu.vector_store %arg15[%c8, %c0_20], %77 {strides = array<i32>} : memref<32x32xf32, #tpu.memory_space<vmem>>, vector<4x32xf32>,
    %79 = vector.extract_strided_slice %6 {offsets = [12, 0], sizes = [4, 96], strides = [1, 1]} : vector<32x96xf32> to vector<4x96xf32>
    %cst_21 = arith.constant dense<0.000000e+00> : vector<4x96xf32>
    %80 = tpu.matmul %77, %7, %cst_21 {dimension_numbers = #tpu.dot_dimension_numbers<[1], [0], [0], [1], [0, 0, 1, 1], [], []>} : vector<4x32xf32>, vector<32x96xf32>, vector<4x96xf32> -> vector<4x96xf32>
    %81 = vector.broadcast %8 : vector<1x96xf32> to vector<4x96xf32>
    %82 = arith.addf %80, %81 : vector<4x96xf32>
    %83 = vector.extract_strided_slice %79 {offsets = [0, 0], sizes = [4, 64], strides = [1, 1]} : vector<4x96xf32> to vector<4x64xf32>
    %84 = vector.extract_strided_slice %82 {offsets = [0, 0], sizes = [4, 64], strides = [1, 1]} : vector<4x96xf32> to vector<4x64xf32>
    %85 = arith.addf %83, %84 : vector<4x64xf32>
    %86 = arith.negf %85 : vector<4x64xf32>
    %87 = math.exp %86 : vector<4x64xf32>
    %cst_22 = arith.constant 1.000000e+00 : f32
    %88 = vector.broadcast %cst_22 : f32 to vector<4x64xf32>
    %89 = arith.addf %88, %87 : vector<4x64xf32>
    %90 = arith.divf %88, %89 : vector<4x64xf32>
    %91 = vector.extract_strided_slice %90 {offsets = [0, 0], sizes = [4, 32], strides = [1, 1]} : vector<4x64xf32> to vector<4x32xf32>
    %92 = vector.extract_strided_slice %90 {offsets = [0, 32], sizes = [4, 32], strides = [1, 1]} : vector<4x64xf32> to vector<4x32xf32>
    %93 = vector.extract_strided_slice %79 {offsets = [0, 64], sizes = [4, 32], strides = [1, 1]} : vector<4x96xf32> to vector<4x32xf32>
    %94 = vector.extract_strided_slice %82 {offsets = [0, 64], sizes = [4, 32], strides = [1, 1]} : vector<4x96xf32> to vector<4x32xf32>
    %95 = arith.mulf %91, %94 : vector<4x32xf32>
    %96 = arith.addf %93, %95 : vector<4x32xf32>
    %97 = math.tanh %96 : vector<4x32xf32>
    %98 = arith.subf %77, %97 : vector<4x32xf32>
    %99 = arith.mulf %92, %98 : vector<4x32xf32>
    %100 = arith.addf %97, %99 : vector<4x32xf32>
    %c12 = arith.constant 12 : index
    %c0_23 = arith.constant 0 : index
    %101 = vector.load %arg15[%c12, %c0_23] : memref<32x32xf32, #tpu.memory_space<vmem>>, vector<4x32xf32>
    tpu.vector_store %arg15[%c12, %c0_23], %100 {strides = array<i32>} : memref<32x32xf32, #tpu.memory_space<vmem>>, vector<4x32xf32>,
    %102 = vector.extract_strided_slice %6 {offsets = [16, 0], sizes = [4, 96], strides = [1, 1]} : vector<32x96xf32> to vector<4x96xf32>
    %cst_24 = arith.constant dense<0.000000e+00> : vector<4x96xf32>
    %103 = tpu.matmul %100, %7, %cst_24 {dimension_numbers = #tpu.dot_dimension_numbers<[1], [0], [0], [1], [0, 0, 1, 1], [], []>} : vector<4x32xf32>, vector<32x96xf32>, vector<4x96xf32> -> vector<4x96xf32>
    %104 = vector.broadcast %8 : vector<1x96xf32> to vector<4x96xf32>
    %105 = arith.addf %103, %104 : vector<4x96xf32>
    %106 = vector.extract_strided_slice %102 {offsets = [0, 0], sizes = [4, 64], strides = [1, 1]} : vector<4x96xf32> to vector<4x64xf32>
    %107 = vector.extract_strided_slice %105 {offsets = [0, 0], sizes = [4, 64], strides = [1, 1]} : vector<4x96xf32> to vector<4x64xf32>
    %108 = arith.addf %106, %107 : vector<4x64xf32>
    %109 = arith.negf %108 : vector<4x64xf32>
    %110 = math.exp %109 : vector<4x64xf32>
    %cst_25 = arith.constant 1.000000e+00 : f32
    %111 = vector.broadcast %cst_25 : f32 to vector<4x64xf32>
    %112 = arith.addf %111, %110 : vector<4x64xf32>
    %113 = arith.divf %111, %112 : vector<4x64xf32>
    %114 = vector.extract_strided_slice %113 {offsets = [0, 0], sizes = [4, 32], strides = [1, 1]} : vector<4x64xf32> to vector<4x32xf32>
    %115 = vector.extract_strided_slice %113 {offsets = [0, 32], sizes = [4, 32], strides = [1, 1]} : vector<4x64xf32> to vector<4x32xf32>
    %116 = vector.extract_strided_slice %102 {offsets = [0, 64], sizes = [4, 32], strides = [1, 1]} : vector<4x96xf32> to vector<4x32xf32>
    %117 = vector.extract_strided_slice %105 {offsets = [0, 64], sizes = [4, 32], strides = [1, 1]} : vector<4x96xf32> to vector<4x32xf32>
    %118 = arith.mulf %114, %117 : vector<4x32xf32>
    %119 = arith.addf %116, %118 : vector<4x32xf32>
    %120 = math.tanh %119 : vector<4x32xf32>
    %121 = arith.subf %100, %120 : vector<4x32xf32>
    %122 = arith.mulf %115, %121 : vector<4x32xf32>
    %123 = arith.addf %120, %122 : vector<4x32xf32>
    %c16 = arith.constant 16 : index
    %c0_26 = arith.constant 0 : index
    %124 = vector.load %arg15[%c16, %c0_26] : memref<32x32xf32, #tpu.memory_space<vmem>>, vector<4x32xf32>
    tpu.vector_store %arg15[%c16, %c0_26], %123 {strides = array<i32>} : memref<32x32xf32, #tpu.memory_space<vmem>>, vector<4x32xf32>,
    %125 = vector.extract_strided_slice %6 {offsets = [20, 0], sizes = [4, 96], strides = [1, 1]} : vector<32x96xf32> to vector<4x96xf32>
    %cst_27 = arith.constant dense<0.000000e+00> : vector<4x96xf32>
    %126 = tpu.matmul %123, %7, %cst_27 {dimension_numbers = #tpu.dot_dimension_numbers<[1], [0], [0], [1], [0, 0, 1, 1], [], []>} : vector<4x32xf32>, vector<32x96xf32>, vector<4x96xf32> -> vector<4x96xf32>
    %127 = vector.broadcast %8 : vector<1x96xf32> to vector<4x96xf32>
    %128 = arith.addf %126, %127 : vector<4x96xf32>
    %129 = vector.extract_strided_slice %125 {offsets = [0, 0], sizes = [4, 64], strides = [1, 1]} : vector<4x96xf32> to vector<4x64xf32>
    %130 = vector.extract_strided_slice %128 {offsets = [0, 0], sizes = [4, 64], strides = [1, 1]} : vector<4x96xf32> to vector<4x64xf32>
    %131 = arith.addf %129, %130 : vector<4x64xf32>
    %132 = arith.negf %131 : vector<4x64xf32>
    %133 = math.exp %132 : vector<4x64xf32>
    %cst_28 = arith.constant 1.000000e+00 : f32
    %134 = vector.broadcast %cst_28 : f32 to vector<4x64xf32>
    %135 = arith.addf %134, %133 : vector<4x64xf32>
    %136 = arith.divf %134, %135 : vector<4x64xf32>
    %137 = vector.extract_strided_slice %136 {offsets = [0, 0], sizes = [4, 32], strides = [1, 1]} : vector<4x64xf32> to vector<4x32xf32>
    %138 = vector.extract_strided_slice %136 {offsets = [0, 32], sizes = [4, 32], strides = [1, 1]} : vector<4x64xf32> to vector<4x32xf32>
    %139 = vector.extract_strided_slice %125 {offsets = [0, 64], sizes = [4, 32], strides = [1, 1]} : vector<4x96xf32> to vector<4x32xf32>
    %140 = vector.extract_strided_slice %128 {offsets = [0, 64], sizes = [4, 32], strides = [1, 1]} : vector<4x96xf32> to vector<4x32xf32>
    %141 = arith.mulf %137, %140 : vector<4x32xf32>
    %142 = arith.addf %139, %141 : vector<4x32xf32>
    %143 = math.tanh %142 : vector<4x32xf32>
    %144 = arith.subf %123, %143 : vector<4x32xf32>
    %145 = arith.mulf %138, %144 : vector<4x32xf32>
    %146 = arith.addf %143, %145 : vector<4x32xf32>
    %c20 = arith.constant 20 : index
    %c0_29 = arith.constant 0 : index
    %147 = vector.load %arg15[%c20, %c0_29] : memref<32x32xf32, #tpu.memory_space<vmem>>, vector<4x32xf32>
    tpu.vector_store %arg15[%c20, %c0_29], %146 {strides = array<i32>} : memref<32x32xf32, #tpu.memory_space<vmem>>, vector<4x32xf32>,
    %148 = vector.extract_strided_slice %6 {offsets = [24, 0], sizes = [4, 96], strides = [1, 1]} : vector<32x96xf32> to vector<4x96xf32>
    %cst_30 = arith.constant dense<0.000000e+00> : vector<4x96xf32>
    %149 = tpu.matmul %146, %7, %cst_30 {dimension_numbers = #tpu.dot_dimension_numbers<[1], [0], [0], [1], [0, 0, 1, 1], [], []>} : vector<4x32xf32>, vector<32x96xf32>, vector<4x96xf32> -> vector<4x96xf32>
    %150 = vector.broadcast %8 : vector<1x96xf32> to vector<4x96xf32>
    %151 = arith.addf %149, %150 : vector<4x96xf32>
    %152 = vector.extract_strided_slice %148 {offsets = [0, 0], sizes = [4, 64], strides = [1, 1]} : vector<4x96xf32> to vector<4x64xf32>
    %153 = vector.extract_strided_slice %151 {offsets = [0, 0], sizes = [4, 64], strides = [1, 1]} : vector<4x96xf32> to vector<4x64xf32>
    %154 = arith.addf %152, %153 : vector<4x64xf32>
    %155 = arith.negf %154 : vector<4x64xf32>
    %156 = math.exp %155 : vector<4x64xf32>
    %cst_31 = arith.constant 1.000000e+00 : f32
    %157 = vector.broadcast %cst_31 : f32 to vector<4x64xf32>
    %158 = arith.addf %157, %156 : vector<4x64xf32>
    %159 = arith.divf %157, %158 : vector<4x64xf32>
    %160 = vector.extract_strided_slice %159 {offsets = [0, 0], sizes = [4, 32], strides = [1, 1]} : vector<4x64xf32> to vector<4x32xf32>
    %161 = vector.extract_strided_slice %159 {offsets = [0, 32], sizes = [4, 32], strides = [1, 1]} : vector<4x64xf32> to vector<4x32xf32>
    %162 = vector.extract_strided_slice %148 {offsets = [0, 64], sizes = [4, 32], strides = [1, 1]} : vector<4x96xf32> to vector<4x32xf32>
    %163 = vector.extract_strided_slice %151 {offsets = [0, 64], sizes = [4, 32], strides = [1, 1]} : vector<4x96xf32> to vector<4x32xf32>
    %164 = arith.mulf %160, %163 : vector<4x32xf32>
    %165 = arith.addf %162, %164 : vector<4x32xf32>
    %166 = math.tanh %165 : vector<4x32xf32>
    %167 = arith.subf %146, %166 : vector<4x32xf32>
    %168 = arith.mulf %161, %167 : vector<4x32xf32>
    %169 = arith.addf %166, %168 : vector<4x32xf32>
    %c24 = arith.constant 24 : index
    %c0_32 = arith.constant 0 : index
    %170 = vector.load %arg15[%c24, %c0_32] : memref<32x32xf32, #tpu.memory_space<vmem>>, vector<4x32xf32>
    tpu.vector_store %arg15[%c24, %c0_32], %169 {strides = array<i32>} : memref<32x32xf32, #tpu.memory_space<vmem>>, vector<4x32xf32>,
    %171 = vector.extract_strided_slice %6 {offsets = [28, 0], sizes = [4, 96], strides = [1, 1]} : vector<32x96xf32> to vector<4x96xf32>
    %cst_33 = arith.constant dense<0.000000e+00> : vector<4x96xf32>
    %172 = tpu.matmul %169, %7, %cst_33 {dimension_numbers = #tpu.dot_dimension_numbers<[1], [0], [0], [1], [0, 0, 1, 1], [], []>} : vector<4x32xf32>, vector<32x96xf32>, vector<4x96xf32> -> vector<4x96xf32>
    %173 = vector.broadcast %8 : vector<1x96xf32> to vector<4x96xf32>
    %174 = arith.addf %172, %173 : vector<4x96xf32>
    %175 = vector.extract_strided_slice %171 {offsets = [0, 0], sizes = [4, 64], strides = [1, 1]} : vector<4x96xf32> to vector<4x64xf32>
    %176 = vector.extract_strided_slice %174 {offsets = [0, 0], sizes = [4, 64], strides = [1, 1]} : vector<4x96xf32> to vector<4x64xf32>
    %177 = arith.addf %175, %176 : vector<4x64xf32>
    %178 = arith.negf %177 : vector<4x64xf32>
    %179 = math.exp %178 : vector<4x64xf32>
    %cst_34 = arith.constant 1.000000e+00 : f32
    %180 = vector.broadcast %cst_34 : f32 to vector<4x64xf32>
    %181 = arith.addf %180, %179 : vector<4x64xf32>
    %182 = arith.divf %180, %181 : vector<4x64xf32>
    %183 = vector.extract_strided_slice %182 {offsets = [0, 0], sizes = [4, 32], strides = [1, 1]} : vector<4x64xf32> to vector<4x32xf32>
    %184 = vector.extract_strided_slice %182 {offsets = [0, 32], sizes = [4, 32], strides = [1, 1]} : vector<4x64xf32> to vector<4x32xf32>
    %185 = vector.extract_strided_slice %171 {offsets = [0, 64], sizes = [4, 32], strides = [1, 1]} : vector<4x96xf32> to vector<4x32xf32>
    %186 = vector.extract_strided_slice %174 {offsets = [0, 64], sizes = [4, 32], strides = [1, 1]} : vector<4x96xf32> to vector<4x32xf32>
    %187 = arith.mulf %183, %186 : vector<4x32xf32>
    %188 = arith.addf %185, %187 : vector<4x32xf32>
    %189 = math.tanh %188 : vector<4x32xf32>
    %190 = arith.subf %169, %189 : vector<4x32xf32>
    %191 = arith.mulf %184, %190 : vector<4x32xf32>
    %192 = arith.addf %189, %191 : vector<4x32xf32>
    %c28 = arith.constant 28 : index
    %c0_35 = arith.constant 0 : index
    %193 = vector.load %arg15[%c28, %c0_35] : memref<32x32xf32, #tpu.memory_space<vmem>>, vector<4x32xf32>
    tpu.vector_store %arg15[%c28, %c0_35], %192 {strides = array<i32>} : memref<32x32xf32, #tpu.memory_space<vmem>>, vector<4x32xf32>,
    %c0_36 = arith.constant 0 : index
    %c0_37 = arith.constant 0 : index
    %194 = vector.load %arg14[%c0_36, %c0_37] : memref<4x32xf32, #tpu.memory_space<vmem>>, vector<4x32xf32>
    tpu.vector_store %arg14[%c0_36, %c0_37], %192 {strides = array<i32>} : memref<4x32xf32, #tpu.memory_space<vmem>>, vector<4x32xf32>,
    %c0_38 = arith.constant 0 : index
    %c0_39 = arith.constant 0 : index
    %195 = vector.load %arg15[%c0_38, %c0_39] : memref<32x32xf32, #tpu.memory_space<vmem>>, vector<32x32xf32>
    %c0_40 = arith.constant 0 : index
    %c0_41 = arith.constant 0 : index
    %196 = vector.load %arg6[%c0_40, %c0_41] : memref<32x64xf32, #tpu.memory_space<vmem>>, vector<32x64xf32>
    %cst_42 = arith.constant dense<0.000000e+00> : vector<32x64xf32>
    %197 = tpu.matmul %195, %196, %cst_42 {dimension_numbers = #tpu.dot_dimension_numbers<[1], [0], [0], [1], [0, 0, 1, 1], [], []>} : vector<32x32xf32>, vector<32x64xf32>, vector<32x64xf32> -> vector<32x64xf32>
    %c0_43 = arith.constant 0 : index
    %c0_44 = arith.constant 0 : index
    %198 = vector.load %arg7[%c0_43, %c0_44] : memref<19x64xf32, #tpu.memory_space<vmem>>, vector<19x64xf32>
    %cst_45 = arith.constant dense<0.000000e+00> : vector<32x64xf32>
    %199 = tpu.matmul %0, %198, %cst_45 {dimension_numbers = #tpu.dot_dimension_numbers<[1], [0], [0], [1], [0, 0, 1, 1], [], []>} : vector<32x19xf32>, vector<19x64xf32>, vector<32x64xf32> -> vector<32x64xf32>
    %200 = arith.addf %197, %199 : vector<32x64xf32>
    %c0_46 = arith.constant 0 : index
    %c0_47 = arith.constant 0 : index
    %201 = vector.load %arg8[%c0_46, %c0_47] : memref<1x64xf32, #tpu.memory_space<vmem>>, vector<1x64xf32>
    %202 = vector.broadcast %201 : vector<1x64xf32> to vector<32x64xf32>
    %203 = arith.addf %200, %202 : vector<32x64xf32>
    %cst_48 = arith.constant 0.000000e+00 : f32
    %204 = vector.broadcast %cst_48 : f32 to vector<32x64xf32>
    %205 = arith.cmpf ogt, %203, %204 : vector<32x64xf32>
    %cst_49 = arith.constant 0.00999999977 : f32
    %206 = vector.broadcast %cst_49 : f32 to vector<32x64xf32>
    %207 = arith.mulf %206, %203 : vector<32x64xf32>
    %208 = arith.select %205, %203, %207 : vector<32x64xi1>, vector<32x64xf32>
    %c0_50 = arith.constant 0 : index
    %c0_51 = arith.constant 0 : index
    %209 = vector.load %arg9[%c0_50, %c0_51] : memref<64x64xf32, #tpu.memory_space<vmem>>, vector<64x64xf32>
    %c0_52 = arith.constant 0 : index
    %c0_53 = arith.constant 0 : index
    %210 = vector.load %arg10[%c0_52, %c0_53] : memref<1x64xf32, #tpu.memory_space<vmem>>, vector<1x64xf32>
    %cst_54 = arith.constant dense<0.000000e+00> : vector<32x64xf32>
    %211 = tpu.matmul %208, %209, %cst_54 {dimension_numbers = #tpu.dot_dimension_numbers<[1], [0], [0], [1], [0, 0, 1, 1], [], []>} : vector<32x64xf32>, vector<64x64xf32>, vector<32x64xf32> -> vector<32x64xf32>
    %212 = vector.broadcast %210 : vector<1x64xf32> to vector<32x64xf32>
    %213 = arith.addf %211, %212 : vector<32x64xf32>
    %cst_55 = arith.constant 0.000000e+00 : f32
    %214 = vector.broadcast %cst_55 : f32 to vector<32x64xf32>
    %215 = arith.cmpf ogt, %213, %214 : vector<32x64xf32>
    %cst_56 = arith.constant 0.00999999977 : f32
    %216 = vector.broadcast %cst_56 : f32 to vector<32x64xf32>
    %217 = arith.mulf %216, %213 : vector<32x64xf32>
    %218 = arith.select %215, %213, %217 : vector<32x64xi1>, vector<32x64xf32>
    %c0_57 = arith.constant 0 : index
    %c0_58 = arith.constant 0 : index
    %219 = vector.load %arg11[%c0_57, %c0_58] : memref<64x128xf32, #tpu.memory_space<vmem>>, vector<64x128xf32>
    %c0_59 = arith.constant 0 : index
    %c0_60 = arith.constant 0 : index
    %220 = vector.load %arg12[%c0_59, %c0_60] : memref<1x128xf32, #tpu.memory_space<vmem>>, vector<1x128xf32>
    %cst_61 = arith.constant dense<0.000000e+00> : vector<32x128xf32>
    %221 = tpu.matmul %218, %219, %cst_61 {dimension_numbers = #tpu.dot_dimension_numbers<[1], [0], [0], [1], [0, 0, 1, 1], [], []>} : vector<32x64xf32>, vector<64x128xf32>, vector<32x128xf32> -> vector<32x128xf32>
    %222 = vector.broadcast %220 : vector<1x128xf32> to vector<32x128xf32>
    %223 = arith.addf %221, %222 : vector<32x128xf32>
    %c0_62 = arith.constant 0 : index
    %c0_63 = arith.constant 0 : index
    %224 = vector.load %arg13[%c0_62, %c0_63] : memref<32x128xf32, #tpu.memory_space<vmem>>, vector<32x128xf32>
    tpu.vector_store %arg13[%c0_62, %c0_63], %223 {strides = array<i32>} : memref<32x128xf32, #tpu.memory_space<vmem>>, vector<32x128xf32>,
    return
  }
}

</mosaic_0001>

<llo_original>
// kernel: tpu_custom_call.1
$region0: #{tpu_custom_call.1}
  #allocation0 [shape = 'u32[]', space=smem, size = 0x4, offset = 0x4, fixed_abs, tag = 'smem constant byte address 0x4 - core index']
  #allocation1 [shape = 'u32[72,128]{1,0:T(1,128)}', space=vmem, size = 0x9000, scoped, tag = 'internal scratch']
  #allocation2 [shape = 'f32[32,32]{1,0:T(8,128)}', space=vmem, size = 0x4000, scoped, tag = 'scratch operand']
  %s0 = inlined_call_operand.vmem [shape: f32[32,19], index: 0, kind: input, shape index: {}]
  %s1 = inlined_call_operand.hbm [shape: f32[4,32], index: 1, kind: input, shape index: {}]
  %s2 = inlined_call_operand.hbm [shape: f32[16,96], index: 2, kind: input, shape index: {}]
  %s3 = inlined_call_operand.hbm [shape: f32[32,96], index: 3, kind: input, shape index: {}]
  %s4 = inlined_call_operand.hbm [shape: f32[1,96], index: 4, kind: input, shape index: {}]
  %s5 = inlined_call_operand.hbm [shape: f32[1,96], index: 5, kind: input, shape index: {}]
  %s6 = inlined_call_operand.hbm [shape: f32[32,64], index: 6, kind: input, shape index: {}]
  %s7 = inlined_call_operand.hbm [shape: f32[19,64], index: 7, kind: input, shape index: {}]
  %s8 = inlined_call_operand.hbm [shape: f32[1,64], index: 8, kind: input, shape index: {}]
  %s9 = inlined_call_operand.vmem [shape: f32[64,64], index: 9, kind: input, shape index: {}]
  %s10 = inlined_call_operand.vmem [shape: f32[1,64], index: 10, kind: input, shape index: {}]
  %s11 = inlined_call_operand.hbm [shape: f32[64,128], index: 11, kind: input, shape index: {}]
  %s12 = inlined_call_operand.vmem [shape: f32[1,128], index: 12, kind: input, shape index: {}]
  %s13 = inlined_call_operand.hbm [shape: f32[32,128], index: 13, kind: output, shape index: {0}]
  %s14 = inlined_call_operand.hbm [shape: f32[4,32], index: 14, kind: output, shape index: {1}]
  %15 = xla_tuple %s13, %s14
  %s16 = sld [smem:[#allocation0]]
  $region106: #{tpu_custom_call.1} parent=0
    _
  %s18 = ssub.s32 1, %s16
  %s19 = scalar_select 0, %s18, %s16
  $region1: #{tpu_custom_call.1} parent=0
    #allocation3 [shape = 'u8[2048]{0}', space=vmem, size = 0x800, scoped, tag = 'input window, operand 1, single buffered']
    #allocation4 [shape = 's32[1]{0}', space=sflag, size = 0x4, scoped, tag = 'scoped memory for tpu_custom_call.1']
    #allocation5 [shape = 's32[1]{0}', space=sflag, size = 0x4, scoped, tag = 'scoped memory for tpu_custom_call.1']
    #allocation6 [shape = 'u8[8192]{0}', space=vmem, size = 0x2000, scoped, tag = 'input window, operand 2, single buffered']
    #allocation7 [shape = 's32[1]{0}', space=sflag, size = 0x4, scoped, tag = 'scoped memory for tpu_custom_call.1']
    #allocation8 [shape = 'u8[16384]{0}', space=vmem, size = 0x4000, scoped, tag = 'input window, operand 3, single buffered']
    #allocation9 [shape = 'u8[512]{0}', space=vmem, size = 0x400, scoped, tag = 'input window, operand 4, single buffered']
    #allocation10 [shape = 's32[1]{0}', space=sflag, size = 0x4, scoped, tag = 'scoped memory for tpu_custom_call.1']
    #allocation11 [shape = 'u8[512]{0}', space=vmem, size = 0x400, scoped, tag = 'input window, operand 5, single buffered']
    #allocation12 [shape = 'u8[16384]{0}', space=vmem, size = 0x4000, scoped, tag = 'input window, operand 6, single buffered']
    #allocation13 [shape = 's32[1]{0}', space=sflag, size = 0x4, scoped, tag = 'scoped memory for tpu_custom_call.1']
    #allocation14 [shape = 'u8[12288]{0}', space=vmem, size = 0x3000, scoped, tag = 'input window, operand 7, single buffered']
    #allocation15 [shape = 'u8[512]{0}', space=vmem, size = 0x400, scoped, tag = 'input window, operand 8, single buffered']
    #allocation16 [shape = 's32[1]{0}', space=sflag, size = 0x4, scoped, tag = 'scoped memory for tpu_custom_call.1']
    #allocation17 [shape = 'u8[32768]{0}', space=vmem, size = 0x8000, scoped, tag = 'input window, operand 11, single buffered']
    #allocation18 [shape = 'u8[16384]{0}', space=vmem, size = 0x4000, scoped, tag = 'output window, operand 0, single buffered']
    #allocation19 [shape = 'u8[2048]{0}', space=vmem, size = 0x800, scoped, tag = 'output window, operand 1, single buffered']
    #allocation20 [shape = 's32[1]{0}', space=sflag, size = 0x4, scoped, tag = 'scoped memory for tpu_custom_call.1']
    %20 = vsyncpa [#allocation4], 0
    %21 = vsyncpa [#allocation7], 0
    %22 = vsyncpa [#allocation10], 0
    %23 = vsyncpa [#allocation13], 0
    %24 = vsyncpa [#allocation16], 0
    %25 = vsyncpa [#allocation5], 0
    %26 = vsyncpa [#allocation20], 0
    // Predicated region
    $region2: #{tpu_custom_call.1} parent=1 // pred_check
      _
    $region3: #{tpu_custom_call.1} parent=1 // pred_check_branch
      %28 = sbr.rel (0) target = $region5
    $region4: #{tpu_custom_call.1} parent=1 // pred_region
      _
    $region5: #{tpu_custom_call.1} parent=1 // pred_fallthru
      _
    // Predicated region
    $region6: #{tpu_custom_call.1} parent=1 // pred_check
      _
    $region7: #{tpu_custom_call.1} parent=1 // pred_check_branch
      %30 = sbr.rel (0) target = $region9
    $region8: #{tpu_custom_call.1} parent=1 // pred_region
      %32 = vsyncadd [#allocation4], 0
      %s34 = sshll.u32 %s1, 4
      %s35 = int_to_ptr.hbm [resolvable:$true] %s34
      %s36 = sshll.u32 [#allocation3], 4
      %s37 = int_to_ptr.vmem [resolvable:$true] %s36
      %39 = dma.hbm_to_vmem [thread:$0]  %s35, 64, %s37, [#allocation4]
    $region9: #{tpu_custom_call.1} parent=1 // pred_fallthru
      _
    // Predicated region
    $region10: #{tpu_custom_call.1} parent=1 // pred_check
      _
    $region11: #{tpu_custom_call.1} parent=1 // pred_check_branch
      %41 = sbr.rel (0) target = $region13
    $region12: #{tpu_custom_call.1} parent=1 // pred_region
      %43 = vsyncadd [#allocation7], 0
      %s44 = sshll.u32 %s2, 4
      %s45 = int_to_ptr.hbm [resolvable:$true] %s44
      %s46 = sshll.u32 [#allocation6], 4
      %s47 = int_to_ptr.vmem [resolvable:$true] %s46
      %52 = dma.hbm_to_vmem [thread:$0]  %s45, 256, %s47, [#allocation7], 128, 128, 8
    $region13: #{tpu_custom_call.1} parent=1 // pred_fallthru
      _
    // Predicated region
    $region14: #{tpu_custom_call.1} parent=1 // pred_check
      _
    $region15: #{tpu_custom_call.1} parent=1 // pred_check_branch
      %54 = sbr.rel (0) target = $region17
    $region16: #{tpu_custom_call.1} parent=1 // pred_region
      %56 = vsyncadd [#allocation7], 0
      %s57 = sshll.u32 %s3, 4
      %s58 = int_to_ptr.hbm [resolvable:$true] %s57
      %s59 = sshll.u32 [#allocation8], 4
      %s60 = int_to_ptr.vmem [resolvable:$true] %s59
      %65 = dma.hbm_to_vmem [thread:$0]  %s58, 512, %s60, [#allocation7], 128, 128, 8
    $region17: #{tpu_custom_call.1} parent=1 // pred_fallthru
      _
    // Predicated region
    $region18: #{tpu_custom_call.1} parent=1 // pred_check
      _
    $region19: #{tpu_custom_call.1} parent=1 // pred_check_branch
      %67 = sbr.rel (0) target = $region21
    $region20: #{tpu_custom_call.1} parent=1 // pred_region
      %69 = vsyncadd [#allocation10], 0
      %s71 = sshll.u32 %s4, 4
      %s72 = int_to_ptr.hbm [resolvable:$true] %s71
      %s73 = sshll.u32 [#allocation9], 4
      %s74 = int_to_ptr.vmem [resolvable:$true] %s73
      %76 = dma.hbm_to_vmem [thread:$0]  %s72, 16, %s74, [#allocation10]
    $region21: #{tpu_custom_call.1} parent=1 // pred_fallthru
      _
    // Predicated region
    $region22: #{tpu_custom_call.1} parent=1 // pred_check
      _
    $region23: #{tpu_custom_call.1} parent=1 // pred_check_branch
      %78 = sbr.rel (0) target = $region25
    $region24: #{tpu_custom_call.1} parent=1 // pred_region
      %80 = vsyncadd [#allocation10], 0
      %s82 = sshll.u32 %s5, 4
      %s83 = int_to_ptr.hbm [resolvable:$true] %s82
      %s84 = sshll.u32 [#allocation11], 4
      %s85 = int_to_ptr.vmem [resolvable:$true] %s84
      %87 = dma.hbm_to_vmem [thread:$0]  %s83, 16, %s85, [#allocation10]
    $region25: #{tpu_custom_call.1} parent=1 // pred_fallthru
      _
    // Predicated region
    $region26: #{tpu_custom_call.1} parent=1 // pred_check
      _
    $region27: #{tpu_custom_call.1} parent=1 // pred_check_branch
      %89 = sbr.rel (0) target = $region29
    $region28: #{tpu_custom_call.1} parent=1 // pred_region
      %91 = vsyncadd [#allocation13], 0
      %s92 = sshll.u32 %s6, 4
      %s93 = int_to_ptr.hbm [resolvable:$true] %s92
      %s94 = sshll.u32 [#allocation12], 4
      %s95 = int_to_ptr.vmem [resolvable:$true] %s94
      %100 = dma.hbm_to_vmem [thread:$0]  %s93, 512, %s95, [#allocation13], 128, 128, 8
    $region29: #{tpu_custom_call.1} parent=1 // pred_fallthru
      _
    // Predicated region
    $region30: #{tpu_custom_call.1} parent=1 // pred_check
      _
    $region31: #{tpu_custom_call.1} parent=1 // pred_check_branch
      %102 = sbr.rel (0) target = $region33
    $region32: #{tpu_custom_call.1} parent=1 // pred_region
      %104 = vsyncadd [#allocation13], 0
      %s105 = sshll.u32 %s7, 4
      %s106 = int_to_ptr.hbm [resolvable:$true] %s105
      %s107 = sshll.u32 [#allocation14], 4
      %s108 = int_to_ptr.vmem [resolvable:$true] %s107
      %113 = dma.hbm_to_vmem [thread:$0]  %s106, 384, %s108, [#allocation13], 128, 128, 8
    $region33: #{tpu_custom_call.1} parent=1 // pred_fallthru
      _
    // Predicated region
    $region34: #{tpu_custom_call.1} parent=1 // pred_check
      _
    $region35: #{tpu_custom_call.1} parent=1 // pred_check_branch
      %115 = sbr.rel (0) target = $region37
    $region36: #{tpu_custom_call.1} parent=1 // pred_region
      %117 = vsyncadd [#allocation16], 0
      %s119 = sshll.u32 %s8, 4
      %s120 = int_to_ptr.hbm [resolvable:$true] %s119
      %s121 = sshll.u32 [#allocation15], 4
      %s122 = int_to_ptr.vmem [resolvable:$true] %s121
      %124 = dma.hbm_to_vmem [thread:$0]  %s120, 16, %s122, [#allocation16]
    $region37: #{tpu_custom_call.1} parent=1 // pred_fallthru
      _
    // Predicated region
    $region38: #{tpu_custom_call.1} parent=1 // pred_check
      _
    $region39: #{tpu_custom_call.1} parent=1 // pred_check_branch
      %126 = sbr.rel (0) target = $region41
    $region40: #{tpu_custom_call.1} parent=1 // pred_region
      _
    $region41: #{tpu_custom_call.1} parent=1 // pred_fallthru
      _
    // Predicated region
    $region42: #{tpu_custom_call.1} parent=1 // pred_check
      _
    $region43: #{tpu_custom_call.1} parent=1 // pred_check_branch
      %128 = sbr.rel (0) target = $region45
    $region44: #{tpu_custom_call.1} parent=1 // pred_region
      _
    $region45: #{tpu_custom_call.1} parent=1 // pred_fallthru
      _
    // Predicated region
    $region46: #{tpu_custom_call.1} parent=1 // pred_check
      _
    $region47: #{tpu_custom_call.1} parent=1 // pred_check_branch
      %130 = sbr.rel (0) target = $region49
    $region48: #{tpu_custom_call.1} parent=1 // pred_region
      %132 = vsyncadd [#allocation16], 0
      %s133 = sshll.u32 %s11, 4
      %s134 = int_to_ptr.hbm [resolvable:$true] %s133
      %s135 = sshll.u32 [#allocation17], 4
      %s136 = int_to_ptr.vmem [resolvable:$true] %s135
      %141 = dma.hbm_to_vmem [thread:$0]  %s134, 1024, %s136, [#allocation16], 128, 128, 8
    $region49: #{tpu_custom_call.1} parent=1 // pred_fallthru
      _
    // Predicated region
    $region50: #{tpu_custom_call.1} parent=1 // pred_check
      _
    $region51: #{tpu_custom_call.1} parent=1 // pred_check_branch
      %143 = sbr.rel (0) target = $region53
    $region52: #{tpu_custom_call.1} parent=1 // pred_region
      _
    $region53: #{tpu_custom_call.1} parent=1 // pred_fallthru
      _
    // Predicated region
    $region54: #{tpu_custom_call.1} parent=1 // pred_check
      _
    $region55: #{tpu_custom_call.1} parent=1 // pred_check_branch
      %145 = sbr.rel (0) target = $region57
    $region56: #{tpu_custom_call.1} parent=1 // pred_region
      %147 = dma.done [#allocation4], 64
    $region57: #{tpu_custom_call.1} parent=1 // pred_fallthru
      _
    // Predicated region
    $region58: #{tpu_custom_call.1} parent=1 // pred_check
      _
    $region59: #{tpu_custom_call.1} parent=1 // pred_check_branch
      %149 = sbr.rel (0) target = $region61
    $region60: #{tpu_custom_call.1} parent=1 // pred_region
      %151 = dma.done [#allocation7], 256
    $region61: #{tpu_custom_call.1} parent=1 // pred_fallthru
      _
    // Predicated region
    $region62: #{tpu_custom_call.1} parent=1 // pred_check
      _
    $region63: #{tpu_custom_call.1} parent=1 // pred_check_branch
      %153 = sbr.rel (0) target = $region65
    $region64: #{tpu_custom_call.1} parent=1 // pred_region
      %155 = dma.done [#allocation7], 512
    $region65: #{tpu_custom_call.1} parent=1 // pred_fallthru
      _
    // Predicated region
    $region66: #{tpu_custom_call.1} parent=1 // pred_check
      _
    $region67: #{tpu_custom_call.1} parent=1 // pred_check_branch
      %157 = sbr.rel (0) target = $region69
    $region68: #{tpu_custom_call.1} parent=1 // pred_region
      %159 = dma.done [#allocation10], 16
    $region69: #{tpu_custom_call.1} parent=1 // pred_fallthru
      _
    // Predicated region
    $region70: #{tpu_custom_call.1} parent=1 // pred_check
      _
    $region71: #{tpu_custom_call.1} parent=1 // pred_check_branch
      %161 = sbr.rel (0) target = $region73
    $region72: #{tpu_custom_call.1} parent=1 // pred_region
      %163 = dma.done [#allocation10], 16
    $region73: #{tpu_custom_call.1} parent=1 // pred_fallthru
      _
    // Predicated region
    $region74: #{tpu_custom_call.1} parent=1 // pred_check
      _
    $region75: #{tpu_custom_call.1} parent=1 // pred_check_branch
      %165 = sbr.rel (0) target = $region77
    $region76: #{tpu_custom_call.1} parent=1 // pred_region
      %167 = dma.done [#allocation13], 512
    $region77: #{tpu_custom_call.1} parent=1 // pred_fallthru
      _
    // Predicated region
    $region78: #{tpu_custom_call.1} parent=1 // pred_check
      _
    $region79: #{tpu_custom_call.1} parent=1 // pred_check_branch
      %169 = sbr.rel (0) target = $region81
    $region80: #{tpu_custom_call.1} parent=1 // pred_region
      %171 = dma.done [#allocation13], 384
    $region81: #{tpu_custom_call.1} parent=1 // pred_fallthru
      _
    // Predicated region
    $region82: #{tpu_custom_call.1} parent=1 // pred_check
      _
    $region83: #{tpu_custom_call.1} parent=1 // pred_check_branch
      %173 = sbr.rel (0) target = $region85
    $region84: #{tpu_custom_call.1} parent=1 // pred_region
      %175 = dma.done [#allocation16], 16
    $region85: #{tpu_custom_call.1} parent=1 // pred_fallthru
      _
    // Predicated region
    $region86: #{tpu_custom_call.1} parent=1 // pred_check
      _
    $region87: #{tpu_custom_call.1} parent=1 // pred_check_branch
      %177 = sbr.rel (0) target = $region89
    $region88: #{tpu_custom_call.1} parent=1 // pred_region
      %179 = dma.done [#allocation16], 1024
    $region89: #{tpu_custom_call.1} parent=1 // pred_fallthru
      _
    %v180 = vld [vmem:[%s0] sm:$0xff]
    %v181 = vld [vmem:[%s0 + $0x8] sm:$0xff]
    %v182 = vld [vmem:[%s0 + $0x10] sm:$0xff]
    %v183 = vld [vmem:[%s0 + $0x18] sm:$0xff]
    %v184 = vld [vmem:[#allocation6] sm:$0xff]
    %v185 = vld [vmem:[#allocation6 + $0x8] sm:$0xff]
    %v186 = vld [vmem:[#allocation9] sm:$0x1]
    %v188 = vperm.slane %v186, 0
    %vm190 = vcmask 130048
    %v192 = vsel %vm190, %v180, 0
    %v195 = vsel %vm190, %v181, 0
    %v198 = vsel %vm190, %v182, 0
    %v201 = vsel %vm190, %v183, 0
    %203 = vmatpush.msra.mxu0 0.0
    %204 = vmatpush.msra.mxu0 0.0
    %205 = vmatpush.msra.mxu0 0.0
    %206 = vmatpush.msra.mxu0 0.0
    %207 = vmatpush.msra.mxu0 0.0
    %208 = vmatpush.msra.mxu0 0.0
    %209 = vmatpush.msra.mxu0 0.0
    %210 = vmatpush.msra.mxu0 0.0
    %211 = vmatpush.msra.mxu0 0.0
    %212 = vmatpush.msra.mxu0 0.0
    %213 = vmatpush.msra.mxu0 0.0
    %214 = vmatpush.msra.mxu0 0.0
    %215 = vmatpush.msra.mxu0 0.0
    %216 = vmatpush.msra.mxu0 0.0
    %217 = vmatpush.msra.mxu0 %v185
    %218 = vmatpush.msra.mxu0 %v184
    %219 = vmatmul.f32.gmra.mxu0 %v192
    %v220 = vpop.f32.mrf.mxu0
    %v221 = vadd.f32 %v188, %v220
    %222 = vmatmul.f32.gmra.mxu0 %v195
    %v223 = vpop.f32.mrf.mxu0
    %v224 = vadd.f32 %v188, %v223
    %225 = vmatmul.f32.gmra.mxu0 %v198
    %v226 = vpop.f32.mrf.mxu0
    %v227 = vadd.f32 %v188, %v226
    %228 = vmatmul.f32.gmra.mxu0 %v201
    %v229 = vpop.f32.mrf.mxu0
    %v230 = vadd.f32 %v188, %v229
    %231 = vdwg.mxu0
    %v232 = vld [vmem:[#allocation8] sm:$0xff]
    %v233 = vld [vmem:[#allocation8 + $0x8] sm:$0xff]
    %v234 = vld [vmem:[#allocation8 + $0x10] sm:$0xff]
    %v235 = vld [vmem:[#allocation8 + $0x18] sm:$0xff]
    %v236 = vld [vmem:[#allocation11] sm:$0x1]
    %v237 = vld [vmem:[#allocation3] sm:$0xf]
    %v239 = vperm.slane %v236, 0
    %vm241 = vcmask 261120
    %v243 = vsel %vm241, %v237, 0
    %245 = vmatpush.msra.mxu0 0.0
    %246 = vmatpush.msra.mxu0 0.0
    %247 = vmatpush.msra.mxu0 0.0
    %248 = vmatpush.msra.mxu0 0.0
    %249 = vmatpush.msra.mxu0 0.0
    %250 = vmatpush.msra.mxu0 0.0
    %251 = vmatpush.msra.mxu0 0.0
    %252 = vmatpush.msra.mxu0 0.0
    %253 = vmatpush.msra.mxu0 0.0
    %254 = vmatpush.msra.mxu0 0.0
    %255 = vmatpush.msra.mxu0 0.0
    %256 = vmatpush.msra.mxu0 0.0
    %257 = vmatpush.msra.mxu0 %v235
    %258 = vmatpush.msra.mxu0 %v234
    %259 = vmatpush.msra.mxu0 %v233
    %260 = vmatpush.msra.mxu0 %v232
    %261 = vmatmul.f32.gmra.mxu0 %v243
    %v262 = vpop.f32.mrf.mxu0
    %v263 = vadd.f32 %v239, %v262
    %264 = vdwg.mxu0
    %v265 = vadd.f32 %v221, %v263
    %v266 = vxor.u32 %v265, 2147483648
    %v267 = vmul.f32 %v266, 1.442695
    %v268 = vpow.pop %v267
    %v269 = vadd.f32 %v268, 1.0
    %v270 = vrcp.pop %v269
    %v271 = vmul.f32 %v269, %v270
    %v272 = vsub.f32 1.0, %v271
    %v273 = vmul.f32 %v270, %v272
    %v274 = vadd.f32 %v270, %v273
    %vm275 = vweird.f32 %v269
    %vm276 = vweird.f32 %v270
    %vm277 = vmor %vm275, %vm276
    %v278 = vsel %vm277, %v270, %v274
    %v279 = vand.u32 2147483647, %v269
    %vm280 = vcmp.eq.f32.partialorder %v279, 8.507059e+37
    %v281 = vand.u32 %v269, 2147483648
    %v282 = vor.u32 1.1754944e-38, %v281
    %v283 = vsel %vm280, %v282, %v278
    %v284 = vmul.f32 1.0, %v283
    %286 = vrot.lane.b32.xlu0 %v263, 64
    %v287 = vpop.permute.xlu0 %286
    %v289 = vmul.f32 %v284, %v287
    %291 = vrot.lane.b32.xlu0 %v289, 64
    %v292 = vpop.permute.xlu0 %291
    %v294 = vadd.f32 %v221, %v292
    %v295 = vtanh.pop %v294
    %297 = vrot.lane.b32.xlu0 %v295, 64
    %v298 = vpop.permute.xlu0 %297
    %v300 = vsub.f32 %v237, %v298
    %302 = vrot.lane.b32.xlu0 %v300, 32
    %v303 = vpop.permute.xlu0 %302
    %v305 = vmul.f32 %v284, %v303
    %307 = vrot.lane.b32.xlu0 %v305, 32
    %v308 = vpop.permute.xlu0 %307
    %v310 = vadd.f32 %v295, %v308
    %312 = vrot.lane.b32.xlu0 %v310, 64
    %v313 = vpop.permute.xlu0 %312
    %vm315 = vcmask 257024
    %316 = vst.msk [vmem:[#allocation2] sm:$0xf] %vm315, %v313
    %v317 = vsel %vm241, %v313, 0
    %319 = vmatpush.msra.mxu0 0.0
    %320 = vmatpush.msra.mxu0 0.0
    %321 = vmatpush.msra.mxu0 0.0
    %322 = vmatpush.msra.mxu0 0.0
    %323 = vmatpush.msra.mxu0 0.0
    %324 = vmatpush.msra.mxu0 0.0
    %325 = vmatpush.msra.mxu0 0.0
    %326 = vmatpush.msra.mxu0 0.0
    %327 = vmatpush.msra.mxu0 0.0
    %328 = vmatpush.msra.mxu0 0.0
    %329 = vmatpush.msra.mxu0 0.0
    %330 = vmatpush.msra.mxu0 0.0
    %331 = vmatpush.msra.mxu0 %v235
    %332 = vmatpush.msra.mxu0 %v234
    %333 = vmatpush.msra.mxu0 %v233
    %334 = vmatpush.msra.mxu0 %v232
    %335 = vmatmul.f32.gmra.mxu0 %v317
    %v336 = vpop.f32.mrf.mxu0
    %v337 = vadd.f32 %v239, %v336
    %338 = vdwg.mxu0
    %v340 = vrot.slane %v337, 4
    %v342 = vadd.f32 %v221, %v340
    %v343 = vxor.u32 %v342, 2147483648
    %v344 = vmul.f32 %v343, 1.442695
    %v345 = vpow.pop %v344
    %v346 = vadd.f32 %v345, 1.0
    %v347 = vrcp.pop %v346
    %v348 = vmul.f32 %v346, %v347
    %v349 = vsub.f32 1.0, %v348
    %v350 = vmul.f32 %v347, %v349
    %v351 = vadd.f32 %v347, %v350
    %vm352 = vweird.f32 %v346
    %vm353 = vweird.f32 %v347
    %vm354 = vmor %vm352, %vm353
    %v355 = vsel %vm354, %v347, %v351
    %v356 = vand.u32 2147483647, %v346
    %vm357 = vcmp.eq.f32.partialorder %v356, 8.507059e+37
    %v358 = vand.u32 %v346, 2147483648
    %v359 = vor.u32 1.1754944e-38, %v358
    %v360 = vsel %vm357, %v359, %v355
    %v361 = vmul.f32 1.0, %v360
    %362 = vrot.lane.b32.xlu0 %v340, 64
    %v363 = vpop.permute.xlu0 %362
    %v365 = vmul.f32 %v361, %v363
    %367 = vrot.lane.b32.xlu0 %v365, 64
    %v368 = vpop.permute.xlu0 %367
    %v370 = vadd.f32 %v221, %v368
    %v371 = vtanh.pop %v370
    %v373 = vrot.slane %v371, 4
    %v375 = vsub.f32 %v310, %v373
    %v377 = vrot.slane %v375, 4
    %378 = vrot.lane.b32.xlu0 %v377, 96
    %v379 = vpop.permute.xlu0 %378
    %v381 = vmul.f32 %v361, %v379
    %383 = vrot.lane.b32.xlu0 %v381, 32
    %v384 = vpop.permute.xlu0 %383
    %v386 = vadd.f32 %v371, %v384
    %388 = vrot.lane.b32.xlu0 %v386, 64
    %v389 = vpop.permute.xlu0 %388
    %vm391 = vcmask 261124
    %392 = vst.msk [vmem:[#allocation2] sm:$0xf0] %vm391, %v389
    %v393 = vrot.slane %v386, 4
    %394 = vrot.lane.b32.xlu0 %v393, 64
    %v395 = vpop.permute.xlu0 %394
    %v396 = vsel %vm241, %v395, 0
    %398 = vmatpush.msra.mxu0 0.0
    %399 = vmatpush.msra.mxu0 0.0
    %400 = vmatpush.msra.mxu0 0.0
    %401 = vmatpush.msra.mxu0 0.0
    %402 = vmatpush.msra.mxu0 0.0
    %403 = vmatpush.msra.mxu0 0.0
    %404 = vmatpush.msra.mxu0 0.0
    %405 = vmatpush.msra.mxu0 0.0
    %406 = vmatpush.msra.mxu0 0.0
    %407 = vmatpush.msra.mxu0 0.0
    %408 = vmatpush.msra.mxu0 0.0
    %409 = vmatpush.msra.mxu0 0.0
    %410 = vmatpush.msra.mxu0 %v235
    %411 = vmatpush.msra.mxu0 %v234
    %412 = vmatpush.msra.mxu0 %v233
    %413 = vmatpush.msra.mxu0 %v232
    %414 = vmatmul.f32.gmra.mxu0 %v396
    %v415 = vpop.f32.mrf.mxu0
    %v416 = vadd.f32 %v239, %v415
    %417 = vdwg.mxu0
    %v418 = vadd.f32 %v224, %v416
    %v419 = vxor.u32 %v418, 2147483648
    %v420 = vmul.f32 %v419, 1.442695
    %v421 = vpow.pop %v420
    %v422 = vadd.f32 %v421, 1.0
    %v423 = vrcp.pop %v422
    %v424 = vmul.f32 %v422, %v423
    %v425 = vsub.f32 1.0, %v424
    %v426 = vmul.f32 %v423, %v425
    %v427 = vadd.f32 %v423, %v426
    %vm428 = vweird.f32 %v422
    %vm429 = vweird.f32 %v423
    %vm430 = vmor %vm428, %vm429
    %v431 = vsel %vm430, %v423, %v427
    %v432 = vand.u32 2147483647, %v422
    %vm433 = vcmp.eq.f32.partialorder %v432, 8.507059e+37
    %v434 = vand.u32 %v422, 2147483648
    %v435 = vor.u32 1.1754944e-38, %v434
    %v436 = vsel %vm433, %v435, %v431
    %v437 = vmul.f32 1.0, %v436
    %439 = vrot.lane.b32.xlu0 %v416, 64
    %v440 = vpop.permute.xlu0 %439
    %v442 = vmul.f32 %v437, %v440
    %444 = vrot.lane.b32.xlu0 %v442, 64
    %v445 = vpop.permute.xlu0 %444
    %v447 = vadd.f32 %v224, %v445
    %v448 = vtanh.pop %v447
    %v450 = vrot.slane %v448, 4
    %v452 = vsub.f32 %v386, %v450
    %v454 = vrot.slane %v452, 4
    %455 = vrot.lane.b32.xlu0 %v454, 96
    %v456 = vpop.permute.xlu0 %455
    %v458 = vmul.f32 %v437, %v456
    %460 = vrot.lane.b32.xlu0 %v458, 32
    %v461 = vpop.permute.xlu0 %460
    %v463 = vadd.f32 %v448, %v461
    %465 = vrot.lane.b32.xlu0 %v463, 64
    %v466 = vpop.permute.xlu0 %465
    %468 = vst.msk [vmem:[#allocation2 + $0x8] sm:$0xf] %vm315, %v466
    %v469 = vsel %vm241, %v466, 0
    %471 = vmatpush.msra.mxu0 0.0
    %472 = vmatpush.msra.mxu0 0.0
    %473 = vmatpush.msra.mxu0 0.0
    %474 = vmatpush.msra.mxu0 0.0
    %475 = vmatpush.msra.mxu0 0.0
    %476 = vmatpush.msra.mxu0 0.0
    %477 = vmatpush.msra.mxu0 0.0
    %478 = vmatpush.msra.mxu0 0.0
    %479 = vmatpush.msra.mxu0 0.0
    %480 = vmatpush.msra.mxu0 0.0
    %481 = vmatpush.msra.mxu0 0.0
    %482 = vmatpush.msra.mxu0 0.0
    %483 = vmatpush.msra.mxu0 %v235
    %484 = vmatpush.msra.mxu0 %v234
    %485 = vmatpush.msra.mxu0 %v233
    %486 = vmatpush.msra.mxu0 %v232
    %487 = vmatmul.f32.gmra.mxu0 %v469
    %v488 = vpop.f32.mrf.mxu0
    %v489 = vadd.f32 %v239, %v488
    %490 = vdwg.mxu0
    %v492 = vrot.slane %v489, 4
    %v494 = vadd.f32 %v224, %v492
    %v495 = vxor.u32 %v494, 2147483648
    %v496 = vmul.f32 %v495, 1.442695
    %v497 = vpow.pop %v496
    %v498 = vadd.f32 %v497, 1.0
    %v499 = vrcp.pop %v498
    %v500 = vmul.f32 %v498, %v499
    %v501 = vsub.f32 1.0, %v500
    %v502 = vmul.f32 %v499, %v501
    %v503 = vadd.f32 %v499, %v502
    %vm504 = vweird.f32 %v498
    %vm505 = vweird.f32 %v499
    %vm506 = vmor %vm504, %vm505
    %v507 = vsel %vm506, %v499, %v503
    %v508 = vand.u32 2147483647, %v498
    %vm509 = vcmp.eq.f32.partialorder %v508, 8.507059e+37
    %v510 = vand.u32 %v498, 2147483648
    %v511 = vor.u32 1.1754944e-38, %v510
    %v512 = vsel %vm509, %v511, %v507
    %v513 = vmul.f32 1.0, %v512
    %514 = vrot.lane.b32.xlu0 %v492, 64
    %v515 = vpop.permute.xlu0 %514
    %v517 = vmul.f32 %v513, %v515
    %519 = vrot.lane.b32.xlu0 %v517, 64
    %v520 = vpop.permute.xlu0 %519
    %v522 = vadd.f32 %v224, %v520
    %v523 = vtanh.pop %v522
    %v525 = vrot.slane %v523, 4
    %v527 = vsub.f32 %v463, %v525
    %v529 = vrot.slane %v527, 4
    %530 = vrot.lane.b32.xlu0 %v529, 96
    %v531 = vpop.permute.xlu0 %530
    %v533 = vmul.f32 %v513, %v531
    %535 = vrot.lane.b32.xlu0 %v533, 32
    %v536 = vpop.permute.xlu0 %535
    %v538 = vadd.f32 %v523, %v536
    %540 = vrot.lane.b32.xlu0 %v538, 64
    %v541 = vpop.permute.xlu0 %540
    %543 = vst.msk [vmem:[#allocation2 + $0x8] sm:$0xf0] %vm391, %v541
    %v544 = vrot.slane %v538, 4
    %545 = vrot.lane.b32.xlu0 %v544, 64
    %v546 = vpop.permute.xlu0 %545
    %v547 = vsel %vm241, %v546, 0
    %549 = vmatpush.msra.mxu0 0.0
    %550 = vmatpush.msra.mxu0 0.0
    %551 = vmatpush.msra.mxu0 0.0
    %552 = vmatpush.msra.mxu0 0.0
    %553 = vmatpush.msra.mxu0 0.0
    %554 = vmatpush.msra.mxu0 0.0
    %555 = vmatpush.msra.mxu0 0.0
    %556 = vmatpush.msra.mxu0 0.0
    %557 = vmatpush.msra.mxu0 0.0
    %558 = vmatpush.msra.mxu0 0.0
    %559 = vmatpush.msra.mxu0 0.0
    %560 = vmatpush.msra.mxu0 0.0
    %561 = vmatpush.msra.mxu0 %v235
    %562 = vmatpush.msra.mxu0 %v234
    %563 = vmatpush.msra.mxu0 %v233
    %564 = vmatpush.msra.mxu0 %v232
    %565 = vmatmul.f32.gmra.mxu0 %v547
    %v566 = vpop.f32.mrf.mxu0
    %v567 = vadd.f32 %v239, %v566
    %568 = vdwg.mxu0
    %v569 = vadd.f32 %v227, %v567
    %v570 = vxor.u32 %v569, 2147483648
    %v571 = vmul.f32 %v570, 1.442695
    %v572 = vpow.pop %v571
    %v573 = vadd.f32 %v572, 1.0
    %v574 = vrcp.pop %v573
    %v575 = vmul.f32 %v573, %v574
    %v576 = vsub.f32 1.0, %v575
    %v577 = vmul.f32 %v574, %v576
    %v578 = vadd.f32 %v574, %v577
    %vm579 = vweird.f32 %v573
    %vm580 = vweird.f32 %v574
    %vm581 = vmor %vm579, %vm580
    %v582 = vsel %vm581, %v574, %v578
    %v583 = vand.u32 2147483647, %v573
    %vm584 = vcmp.eq.f32.partialorder %v583, 8.507059e+37
    %v585 = vand.u32 %v573, 2147483648
    %v586 = vor.u32 1.1754944e-38, %v585
    %v587 = vsel %vm584, %v586, %v582
    %v588 = vmul.f32 1.0, %v587
    %590 = vrot.lane.b32.xlu0 %v567, 64
    %v591 = vpop.permute.xlu0 %590
    %v593 = vmul.f32 %v588, %v591
    %595 = vrot.lane.b32.xlu0 %v593, 64
    %v596 = vpop.permute.xlu0 %595
    %v598 = vadd.f32 %v227, %v596
    %v599 = vtanh.pop %v598
    %v601 = vrot.slane %v599, 4
    %v603 = vsub.f32 %v538, %v601
    %v605 = vrot.slane %v603, 4
    %606 = vrot.lane.b32.xlu0 %v605, 96
    %v607 = vpop.permute.xlu0 %606
    %v609 = vmul.f32 %v588, %v607
    %611 = vrot.lane.b32.xlu0 %v609, 32
    %v612 = vpop.permute.xlu0 %611
    %v614 = vadd.f32 %v599, %v612
    %616 = vrot.lane.b32.xlu0 %v614, 64
    %v617 = vpop.permute.xlu0 %616
    %619 = vst.msk [vmem:[#allocation2 + $0x10] sm:$0xf] %vm315, %v617
    %v620 = vsel %vm241, %v617, 0
    %622 = vmatpush.msra.mxu0 0.0
    %623 = vmatpush.msra.mxu0 0.0
    %624 = vmatpush.msra.mxu0 0.0
    %625 = vmatpush.msra.mxu0 0.0
    %626 = vmatpush.msra.mxu0 0.0
    %627 = vmatpush.msra.mxu0 0.0
    %628 = vmatpush.msra.mxu0 0.0
    %629 = vmatpush.msra.mxu0 0.0
    %630 = vmatpush.msra.mxu0 0.0
    %631 = vmatpush.msra.mxu0 0.0
    %632 = vmatpush.msra.mxu0 0.0
    %633 = vmatpush.msra.mxu0 0.0
    %634 = vmatpush.msra.mxu0 %v235
    %635 = vmatpush.msra.mxu0 %v234
    %636 = vmatpush.msra.mxu0 %v233
    %637 = vmatpush.msra.mxu0 %v232
    %638 = vmatmul.f32.gmra.mxu0 %v620
    %v639 = vpop.f32.mrf.mxu0
    %v640 = vadd.f32 %v239, %v639
    %641 = vdwg.mxu0
    %v643 = vrot.slane %v640, 4
    %v645 = vadd.f32 %v227, %v643
    %v646 = vxor.u32 %v645, 2147483648
    %v647 = vmul.f32 %v646, 1.442695
    %v648 = vpow.pop %v647
    %v649 = vadd.f32 %v648, 1.0
    %v650 = vrcp.pop %v649
    %v651 = vmul.f32 %v649, %v650
    %v652 = vsub.f32 1.0, %v651
    %v653 = vmul.f32 %v650, %v652
    %v654 = vadd.f32 %v650, %v653
    %vm655 = vweird.f32 %v649
    %vm656 = vweird.f32 %v650
    %vm657 = vmor %vm655, %vm656
    %v658 = vsel %vm657, %v650, %v654
    %v659 = vand.u32 2147483647, %v649
    %vm660 = vcmp.eq.f32.partialorder %v659, 8.507059e+37
    %v661 = vand.u32 %v649, 2147483648
    %v662 = vor.u32 1.1754944e-38, %v661
    %v663 = vsel %vm660, %v662, %v658
    %v664 = vmul.f32 1.0, %v663
    %665 = vrot.lane.b32.xlu0 %v643, 64
    %v666 = vpop.permute.xlu0 %665
    %v668 = vmul.f32 %v664, %v666
    %670 = vrot.lane.b32.xlu0 %v668, 64
    %v671 = vpop.permute.xlu0 %670
    %v673 = vadd.f32 %v227, %v671
    %v674 = vtanh.pop %v673
    %v676 = vrot.slane %v674, 4
    %v678 = vsub.f32 %v614, %v676
    %v680 = vrot.slane %v678, 4
    %681 = vrot.lane.b32.xlu0 %v680, 96
    %v682 = vpop.permute.xlu0 %681
    %v684 = vmul.f32 %v664, %v682
    %686 = vrot.lane.b32.xlu0 %v684, 32
    %v687 = vpop.permute.xlu0 %686
    %v689 = vadd.f32 %v674, %v687
    %691 = vrot.lane.b32.xlu0 %v689, 64
    %v692 = vpop.permute.xlu0 %691
    %694 = vst.msk [vmem:[#allocation2 + $0x10] sm:$0xf0] %vm391, %v692
    %v695 = vrot.slane %v689, 4
    %696 = vrot.lane.b32.xlu0 %v695, 64
    %v697 = vpop.permute.xlu0 %696
    %v698 = vsel %vm241, %v697, 0
    %700 = vmatpush.msra.mxu0 0.0
    %701 = vmatpush.msra.mxu0 0.0
    %702 = vmatpush.msra.mxu0 0.0
    %703 = vmatpush.msra.mxu0 0.0
    %704 = vmatpush.msra.mxu0 0.0
    %705 = vmatpush.msra.mxu0 0.0
    %706 = vmatpush.msra.mxu0 0.0
    %707 = vmatpush.msra.mxu0 0.0
    %708 = vmatpush.msra.mxu0 0.0
    %709 = vmatpush.msra.mxu0 0.0
    %710 = vmatpush.msra.mxu0 0.0
    %711 = vmatpush.msra.mxu0 0.0
    %712 = vmatpush.msra.mxu0 %v235
    %713 = vmatpush.msra.mxu0 %v234
    %714 = vmatpush.msra.mxu0 %v233
    %715 = vmatpush.msra.mxu0 %v232
    %716 = vmatmul.f32.gmra.mxu0 %v698
    %v717 = vpop.f32.mrf.mxu0
    %v718 = vadd.f32 %v239, %v717
    %719 = vdwg.mxu0
    %v720 = vadd.f32 %v230, %v718
    %v721 = vxor.u32 %v720, 2147483648
    %v722 = vmul.f32 %v721, 1.442695
    %v723 = vpow.pop %v722
    %v724 = vadd.f32 %v723, 1.0
    %v725 = vrcp.pop %v724
    %v726 = vmul.f32 %v724, %v725
    %v727 = vsub.f32 1.0, %v726
    %v728 = vmul.f32 %v725, %v727
    %v729 = vadd.f32 %v725, %v728
    %vm730 = vweird.f32 %v724
    %vm731 = vweird.f32 %v725
    %vm732 = vmor %vm730, %vm731
    %v733 = vsel %vm732, %v725, %v729
    %v734 = vand.u32 2147483647, %v724
    %vm735 = vcmp.eq.f32.partialorder %v734, 8.507059e+37
    %v736 = vand.u32 %v724, 2147483648
    %v737 = vor.u32 1.1754944e-38, %v736
    %v738 = vsel %vm735, %v737, %v733
    %v739 = vmul.f32 1.0, %v738
    %741 = vrot.lane.b32.xlu0 %v718, 64
    %v742 = vpop.permute.xlu0 %741
    %v744 = vmul.f32 %v739, %v742
    %746 = vrot.lane.b32.xlu0 %v744, 64
    %v747 = vpop.permute.xlu0 %746
    %v749 = vadd.f32 %v230, %v747
    %v750 = vtanh.pop %v749
    %v752 = vrot.slane %v750, 4
    %v754 = vsub.f32 %v689, %v752
    %v756 = vrot.slane %v754, 4
    %757 = vrot.lane.b32.xlu0 %v756, 96
    %v758 = vpop.permute.xlu0 %757
    %v760 = vmul.f32 %v739, %v758
    %762 = vrot.lane.b32.xlu0 %v760, 32
    %v763 = vpop.permute.xlu0 %762
    %v765 = vadd.f32 %v750, %v763
    %767 = vrot.lane.b32.xlu0 %v765, 64
    %v768 = vpop.permute.xlu0 %767
    %770 = vst.msk [vmem:[#allocation2 + $0x18] sm:$0xf] %vm315, %v768
    %v771 = vsel %vm241, %v768, 0
    %773 = vmatpush.msra.mxu0 0.0
    %774 = vmatpush.msra.mxu0 0.0
    %775 = vmatpush.msra.mxu0 0.0
    %776 = vmatpush.msra.mxu0 0.0
    %777 = vmatpush.msra.mxu0 0.0
    %778 = vmatpush.msra.mxu0 0.0
    %779 = vmatpush.msra.mxu0 0.0
    %780 = vmatpush.msra.mxu0 0.0
    %781 = vmatpush.msra.mxu0 0.0
    %782 = vmatpush.msra.mxu0 0.0
    %783 = vmatpush.msra.mxu0 0.0
    %784 = vmatpush.msra.mxu0 0.0
    %785 = vmatpush.msra.mxu0 %v235
    %786 = vmatpush.msra.mxu0 %v234
    %787 = vmatpush.msra.mxu0 %v233
    %788 = vmatpush.msra.mxu0 %v232
    %789 = vmatmul.f32.gmra.mxu0 %v771
    %v790 = vpop.f32.mrf.mxu0
    %v791 = vadd.f32 %v239, %v790
    %792 = vdwg.mxu0
    %v794 = vrot.slane %v791, 4
    %v796 = vadd.f32 %v230, %v794
    %v797 = vxor.u32 %v796, 2147483648
    %v798 = vmul.f32 %v797, 1.442695
    %v799 = vpow.pop %v798
    %v800 = vadd.f32 %v799, 1.0
    %v801 = vrcp.pop %v800
    %v802 = vmul.f32 %v800, %v801
    %v803 = vsub.f32 1.0, %v802
    %v804 = vmul.f32 %v801, %v803
    %v805 = vadd.f32 %v801, %v804
    %vm806 = vweird.f32 %v800
    %vm807 = vweird.f32 %v801
    %vm808 = vmor %vm806, %vm807
    %v809 = vsel %vm808, %v801, %v805
    %v810 = vand.u32 2147483647, %v800
    %vm811 = vcmp.eq.f32.partialorder %v810, 8.507059e+37
    %v812 = vand.u32 %v800, 2147483648
    %v813 = vor.u32 1.1754944e-38, %v812
    %v814 = vsel %vm811, %v813, %v809
    %v815 = vmul.f32 1.0, %v814
    %816 = vrot.lane.b32.xlu0 %v794, 64
    %v817 = vpop.permute.xlu0 %816
    %v819 = vmul.f32 %v815, %v817
    %821 = vrot.lane.b32.xlu0 %v819, 64
    %v822 = vpop.permute.xlu0 %821
    %v824 = vadd.f32 %v230, %v822
    %v825 = vtanh.pop %v824
    %v827 = vrot.slane %v825, 4
    %v829 = vsub.f32 %v765, %v827
    %v831 = vrot.slane %v829, 4
    %832 = vrot.lane.b32.xlu0 %v831, 96
    %v833 = vpop.permute.xlu0 %832
    %v835 = vmul.f32 %v815, %v833
    %837 = vrot.lane.b32.xlu0 %v835, 32
    %v838 = vpop.permute.xlu0 %837
    %v840 = vadd.f32 %v825, %v838
    %842 = vrot.lane.b32.xlu0 %v840, 64
    %v843 = vpop.permute.xlu0 %842
    %845 = vst.msk [vmem:[#allocation2 + $0x18] sm:$0xf0] %vm391, %v843
    %846 = vst.msk [vmem:[#allocation19 - $0x4] sm:$0xf0] %vm391, %v843
    %v847 = vld [vmem:[#allocation2] sm:$0xff]
    %v848 = vld [vmem:[#allocation2 + $0x8] sm:$0xff]
    %v849 = vld [vmem:[#allocation2 + $0x10] sm:$0xff]
    %v850 = vld [vmem:[#allocation2 + $0x18] sm:$0xff]
    %v851 = vld [vmem:[#allocation12] sm:$0xff]
    %v852 = vld [vmem:[#allocation12 + $0x8] sm:$0xff]
    %v853 = vld [vmem:[#allocation12 + $0x10] sm:$0xff]
    %v854 = vld [vmem:[#allocation12 + $0x18] sm:$0xff]
    %v855 = vld [vmem:[#allocation14] sm:$0xff]
    %v856 = vld [vmem:[#allocation14 + $0x8] sm:$0xff]
    %v857 = vld [vmem:[#allocation14 + $0x10] sm:$0x7]
    %vm858 = vcmask 154624
    %v859 = vsel %vm858, %v180, 0
    %v861 = vsel %vm858, %v181, 0
    %v863 = vsel %vm858, %v182, 0
    %v865 = vsel %vm858, %v183, 0
    %vm867 = vcmask 1042432
    %v869 = vsel %vm867, %v857, 0
    %871 = vmatpush.msra.mxu0 0.0
    %872 = vmatpush.msra.mxu0 0.0
    %873 = vmatpush.msra.mxu0 0.0
    %874 = vmatpush.msra.mxu0 0.0
    %875 = vmatpush.msra.mxu0 0.0
    %876 = vmatpush.msra.mxu0 0.0
    %877 = vmatpush.msra.mxu0 0.0
    %878 = vmatpush.msra.mxu0 0.0
    %879 = vmatpush.msra.mxu0 0.0
    %880 = vmatpush.msra.mxu0 0.0
    %881 = vmatpush.msra.mxu0 0.0
    %882 = vmatpush.msra.mxu0 0.0
    %883 = vmatpush.msra.mxu0 0.0
    %884 = vmatpush.msra.mxu0 %v869
    %885 = vmatpush.msra.mxu0 %v856
    %886 = vmatpush.msra.mxu0 %v855
    %887 = vmatmul.f32.gmra.mxu0 %v859
    %v888 = vpop.f32.mrf.mxu0
    %v889 = vadd.f32 0.0, %v888
    %890 = vmatmul.f32.gmra.mxu0 %v861
    %v891 = vpop.f32.mrf.mxu0
    %v892 = vadd.f32 0.0, %v891
    %893 = vmatmul.f32.gmra.mxu0 %v863
    %v894 = vpop.f32.mrf.mxu0
    %v895 = vadd.f32 0.0, %v894
    %896 = vmatmul.f32.gmra.mxu0 %v865
    %v897 = vpop.f32.mrf.mxu0
    %v898 = vadd.f32 0.0, %v897
    %899 = vdwg.mxu0
    %v901 = vsel %vm241, %v847, 0
    %v904 = vsel %vm241, %v848, 0
    %v907 = vsel %vm241, %v849, 0
    %v910 = vsel %vm241, %v850, 0
    %912 = vmatpush.msra.mxu0 0.0
    %913 = vmatpush.msra.mxu0 0.0
    %914 = vmatpush.msra.mxu0 0.0
    %915 = vmatpush.msra.mxu0 0.0
    %916 = vmatpush.msra.mxu0 0.0
    %917 = vmatpush.msra.mxu0 0.0
    %918 = vmatpush.msra.mxu0 0.0
    %919 = vmatpush.msra.mxu0 0.0
    %920 = vmatpush.msra.mxu0 0.0
    %921 = vmatpush.msra.mxu0 0.0
    %922 = vmatpush.msra.mxu0 0.0
    %923 = vmatpush.msra.mxu0 0.0
    %924 = vmatpush.msra.mxu0 %v854
    %925 = vmatpush.msra.mxu0 %v853
    %926 = vmatpush.msra.mxu0 %v852
    %927 = vmatpush.msra.mxu0 %v851
    %928 = vmatmul.f32.gmra.mxu0 %v901
    %v929 = vpop.f32.mrf.mxu0
    %v930 = vadd.f32 %v889, %v929
    %931 = vmatmul.f32.gmra.mxu0 %v904
    %v932 = vpop.f32.mrf.mxu0
    %v933 = vadd.f32 %v892, %v932
    %934 = vmatmul.f32.gmra.mxu0 %v907
    %v935 = vpop.f32.mrf.mxu0
    %v936 = vadd.f32 %v895, %v935
    %937 = vmatmul.f32.gmra.mxu0 %v910
    %v938 = vpop.f32.mrf.mxu0
    %v939 = vadd.f32 %v898, %v938
    %940 = vdwg.mxu0
    %v941 = vld [vmem:[#allocation15] sm:$0x1]
    %v943 = vperm.slane %v941, 0
    %v945 = vadd.f32 %v930, %v943
    %v946 = vadd.f32 %v933, %v943
    %v947 = vadd.f32 %v936, %v943
    %v948 = vadd.f32 %v939, %v943
    %vm949 = vcmp.gt.f32.partialorder %v945, 0.0
    %vm950 = vcmp.gt.f32.partialorder %v946, 0.0
    %vm951 = vcmp.gt.f32.partialorder %v947, 0.0
    %vm952 = vcmp.gt.f32.partialorder %v948, 0.0
    %v953 = vmul.f32 %v945, 0.01
    %v954 = vmul.f32 %v946, 0.01
    %v955 = vmul.f32 %v947, 0.01
    %v956 = vmul.f32 %v948, 0.01
    %v957 = vsel %vm949, %v945, %v953
    %v958 = vsel %vm950, %v946, %v954
    %v959 = vsel %vm951, %v947, %v955
    %v960 = vsel %vm952, %v948, %v956
    %v961 = vld [vmem:[%s9] sm:$0xff]
    %v962 = vld [vmem:[%s9 + $0x8] sm:$0xff]
    %v963 = vld [vmem:[%s9 + $0x10] sm:$0xff]
    %v964 = vld [vmem:[%s9 + $0x18] sm:$0xff]
    %v965 = vld [vmem:[%s9 + $0x20] sm:$0xff]
    %v966 = vld [vmem:[%s9 + $0x28] sm:$0xff]
    %v967 = vld [vmem:[%s9 + $0x30] sm:$0xff]
    %v968 = vld [vmem:[%s9 + $0x38] sm:$0xff]
    %v969 = vld [vmem:[%s10] sm:$0x1]
    %v971 = vperm.slane %v969, 0
    %vm973 = vcmask 523264
    %v975 = vsel %vm973, %v957, 0
    %v978 = vsel %vm973, %v958, 0
    %v981 = vsel %vm973, %v959, 0
    %v984 = vsel %vm973, %v960, 0
    %986 = vmatpush.msra.mxu0 0.0
    %987 = vmatpush.msra.mxu0 0.0
    %988 = vmatpush.msra.mxu0 0.0
    %989 = vmatpush.msra.mxu0 0.0
    %990 = vmatpush.msra.mxu0 0.0
    %991 = vmatpush.msra.mxu0 0.0
    %992 = vmatpush.msra.mxu0 0.0
    %993 = vmatpush.msra.mxu0 0.0
    %994 = vmatpush.msra.mxu0 %v968
    %995 = vmatpush.msra.mxu0 %v967
    %996 = vmatpush.msra.mxu0 %v966
    %997 = vmatpush.msra.mxu0 %v965
    %998 = vmatpush.msra.mxu0 %v964
    %999 = vmatpush.msra.mxu0 %v963
    %1000 = vmatpush.msra.mxu0 %v962
    %1001 = vmatpush.msra.mxu0 %v961
    %1002 = vmatmul.f32.gmra.mxu0 %v975
    %v1003 = vpop.f32.mrf.mxu0
    %v1004 = vadd.f32 %v971, %v1003
    %1005 = vmatmul.f32.gmra.mxu0 %v978
    %v1006 = vpop.f32.mrf.mxu0
    %v1007 = vadd.f32 %v971, %v1006
    %1008 = vmatmul.f32.gmra.mxu0 %v981
    %v1009 = vpop.f32.mrf.mxu0
    %v1010 = vadd.f32 %v971, %v1009
    %1011 = vmatmul.f32.gmra.mxu0 %v984
    %v1012 = vpop.f32.mrf.mxu0
    %v1013 = vadd.f32 %v971, %v1012
    %1014 = vdwg.mxu0
    %vm1015 = vcmp.gt.f32.partialorder %v1004, 0.0
    %vm1016 = vcmp.gt.f32.partialorder %v1007, 0.0
    %vm1017 = vcmp.gt.f32.partialorder %v1010, 0.0
    %vm1018 = vcmp.gt.f32.partialorder %v1013, 0.0
    %v1019 = vmul.f32 %v1004, 0.01
    %v1020 = vmul.f32 %v1007, 0.01
    %v1021 = vmul.f32 %v1010, 0.01
    %v1022 = vmul.f32 %v1013, 0.01
    %v1023 = vsel %vm1015, %v1004, %v1019
    %v1024 = vsel %vm1016, %v1007, %v1020
    %v1025 = vsel %vm1017, %v1010, %v1021
    %v1026 = vsel %vm1018, %v1013, %v1022
    %v1027 = vld [vmem:[#allocation17] sm:$0xff]
    %v1028 = vld [vmem:[#allocation17 + $0x8] sm:$0xff]
    %v1029 = vld [vmem:[#allocation17 + $0x10] sm:$0xff]
    %v1030 = vld [vmem:[#allocation17 + $0x18] sm:$0xff]
    %v1031 = vld [vmem:[#allocation17 + $0x20] sm:$0xff]
    %v1032 = vld [vmem:[#allocation17 + $0x28] sm:$0xff]
    %v1033 = vld [vmem:[#allocation17 + $0x30] sm:$0xff]
    %v1034 = vld [vmem:[#allocation17 + $0x38] sm:$0xff]
    %v1035 = vld [vmem:[%s12] sm:$0x1]
    %v1037 = vperm.slane %v1035, 0
    %v1040 = vsel %vm973, %v1023, 0
    %v1043 = vsel %vm973, %v1024, 0
    %v1046 = vsel %vm973, %v1025, 0
    %v1049 = vsel %vm973, %v1026, 0
    %1051 = vmatpush.msra.mxu0 0.0
    %1052 = vmatpush.msra.mxu0 0.0
    %1053 = vmatpush.msra.mxu0 0.0
    %1054 = vmatpush.msra.mxu0 0.0
    %1055 = vmatpush.msra.mxu0 0.0
    %1056 = vmatpush.msra.mxu0 0.0
    %1057 = vmatpush.msra.mxu0 0.0
    %1058 = vmatpush.msra.mxu0 0.0
    %1059 = vmatpush.msra.mxu0 %v1034
    %1060 = vmatpush.msra.mxu0 %v1033
    %1061 = vmatpush.msra.mxu0 %v1032
    %1062 = vmatpush.msra.mxu0 %v1031
    %1063 = vmatpush.msra.mxu0 %v1030
    %1064 = vmatpush.msra.mxu0 %v1029
    %1065 = vmatpush.msra.mxu0 %v1028
    %1066 = vmatpush.msra.mxu0 %v1027
    %1067 = vmatmul.f32.gmra.mxu0 %v1040
    %v1068 = vpop.f32.mrf.mxu0
    %v1069 = vadd.f32 %v1037, %v1068
    %1070 = vmatmul.f32.gmra.mxu0 %v1043
    %v1071 = vpop.f32.mrf.mxu0
    %v1072 = vadd.f32 %v1037, %v1071
    %1073 = vmatmul.f32.gmra.mxu0 %v1046
    %v1074 = vpop.f32.mrf.mxu0
    %v1075 = vadd.f32 %v1037, %v1074
    %1076 = vmatmul.f32.gmra.mxu0 %v1049
    %v1077 = vpop.f32.mrf.mxu0
    %v1078 = vadd.f32 %v1037, %v1077
    %1079 = vdwg.mxu0
    %1080 = vst [vmem:[#allocation18] sm:$0xff] %v1069
    %1081 = vst [vmem:[#allocation18 + $0x8] sm:$0xff] %v1072
    %1082 = vst [vmem:[#allocation18 + $0x10] sm:$0xff] %v1075
    %1083 = vst [vmem:[#allocation18 + $0x18] sm:$0xff] %v1078
    // Predicated region
    $region90: #{tpu_custom_call.1} parent=1 // pred_check
      _
    $region91: #{tpu_custom_call.1} parent=1 // pred_check_branch
      %1085 = sbr.rel (0) target = $region93
    $region92: #{tpu_custom_call.1} parent=1 // pred_region
      %1087 = vsyncadd [#allocation5], 0
      %s1088 = sshll.u32 [#allocation18], 4
      %s1089 = int_to_ptr.vmem [resolvable:$true] %s1088
      %s1090 = sshll.u32 %s13, 4
      %s1091 = int_to_ptr.hbm [resolvable:$true] %s1090
      %1096 = dma.vmem_to_hbm [thread:$0]  %s1089, 512, %s1091, [#allocation5], 128, 128, 8
    $region93: #{tpu_custom_call.1} parent=1 // pred_fallthru
      _
    // Predicated region
    $region94: #{tpu_custom_call.1} parent=1 // pred_check
      _
    $region95: #{tpu_custom_call.1} parent=1 // pred_check_branch
      %1098 = sbr.rel (0) target = $region97
    $region96: #{tpu_custom_call.1} parent=1 // pred_region
      %1100 = vsyncadd [#allocation20], 0
      %s1102 = sshll.u32 [#allocation19], 4
      %s1103 = int_to_ptr.vmem [resolvable:$true] %s1102
      %s1104 = sshll.u32 %s14, 4
      %s1105 = int_to_ptr.hbm [resolvable:$true] %s1104
      %1107 = dma.vmem_to_hbm [thread:$0]  %s1103, 64, %s1105, [#allocation20]
    $region97: #{tpu_custom_call.1} parent=1 // pred_fallthru
      _
    // Predicated region
    $region98: #{tpu_custom_call.1} parent=1 // pred_check
      _
    $region99: #{tpu_custom_call.1} parent=1 // pred_check_branch
      %1109 = sbr.rel (0) target = $region101
    $region100: #{tpu_custom_call.1} parent=1 // pred_region
      %1111 = dma.done [#allocation5], 512
    $region101: #{tpu_custom_call.1} parent=1 // pred_fallthru
      _
    // Predicated region
    $region102: #{tpu_custom_call.1} parent=1 // pred_check
      _
    $region103: #{tpu_custom_call.1} parent=1 // pred_check_branch
      %1113 = sbr.rel (0) target = $region105
    $region104: #{tpu_custom_call.1} parent=1 // pred_region
      %1115 = dma.done [#allocation20], 64
    $region105: #{tpu_custom_call.1} parent=1 // pred_fallthru
      _
    %1116 = vsyncpa [#allocation4], 1
    %1117 = vsyncpa [#allocation7], 1
    %1118 = vsyncpa [#allocation10], 1
    %1119 = vsyncpa [#allocation13], 1
    %1120 = vsyncpa [#allocation16], 1
    %1121 = vsyncpa [#allocation5], 1
    %1122 = vsyncpa [#allocation20], 1

</llo_original>
